<compile_context>
chip_gen: v7x
topology: tpu7x:2x2x1
jax: 0.10.0
libtpu: 0.0.40
codegen_flags: <defaults>
</compile_context>

<pallas_src>
import functools
import math

import jax
import jax.numpy as jnp
from jax import lax
from jax.experimental import pallas as pl
from jax.experimental.pallas import tpu as pltpu


def _round_up(x: int, m: int) -> int:
    return (x + m - 1) // m * m


def _cdiv(a: int, b: int) -> int:
    return (a + b - 1) // b


def _atom_embedding_kernel(z_ref, table_ref, out_ref, *, precision):
    """One grid step embeds a block of atoms.

    z_ref    : (BN, 1)            int32   atomic numbers (1-based)
    table_ref: (K_pad, emb_size)  float32 embedding weights (K zero-padded)
    out_ref  : (BN, emb_size)     float32 gathered embeddings
    """
    idx = z_ref[...] - 1                      # (BN, 1), shift to 0-based
    bn = z_ref.shape[0]
    k_pad = table_ref.shape[0]

    # one-hot selection matrix built on the VPU (compare/select slots have
    # slack; the binding resource here is the output HBM writeback).
    col = lax.broadcasted_iota(jnp.int32, (bn, k_pad), 1)
    onehot = (col == idx).astype(table_ref.dtype)

    # gather-as-matmul on the MXU: one-hot x f32 with f32 accumulation is an
    # exact gather of the table rows.
    out_ref[...] = jnp.dot(
        onehot, table_ref[...],
        preferred_element_type=jnp.float32,
        precision=precision,
    ).astype(out_ref.dtype)


def atom_embedding(Z, table, *, block_atoms=2048):
    """Pallas TPU forward of AtomEmbedding:  h = table[Z - 1].

    Z     : (nAtoms,) int, values in [1, num_elements]
    table : (num_elements, emb_size) float32
    """
    n_atoms = int(Z.shape[0])
    num_elements, emb_size = int(table.shape[0]), int(table.shape[1])

    if n_atoms == 0:
        return jnp.zeros((0, emb_size), table.dtype)

    # ---- MXU-friendly K: zero-pad num_elements up to a multiple of 128 -------
    k_pad = _round_up(num_elements, 128)
    table_k = table
    if k_pad != num_elements:
        table_k = jnp.pad(table, ((0, k_pad - num_elements), (0, 0)))

    # ---- generation-aware VMEM limit ------------------------------------------
    # ~half the per-core VMEM: 64 MiB on the 128 MiB parts (v5e/v6e), 32 MiB on
    # v7x (64 MiB per TensorCore).
    try:
        vmem_cap = int(pltpu.get_tpu_info().vmem_capacity_bytes)
    except Exception:
        vmem_cap = 64 * 1024 * 1024
    vmem_limit = max(32 * 1024 * 1024, min(64 * 1024 * 1024, vmem_cap // 2))

    # ---- atom block size -------------------------------------------------------
    # VMEM cost of one pipelined step.  The (bn, 1) int32 index block is
    # lane-padded to (bn, 128) in VMEM, the embedding width is lane-padded to a
    # multiple of 128, and both the table (grid-invariant, still 2 buffers) and
    # the output block are double-buffered by the pipeliner.
    emb_vmem = _round_up(emb_size, 128)

    def _tile_vmem_bytes(b):
        out_b = 2 * b * emb_vmem * 4           # double-buffered output block
        z_b = 2 * b * 128 * 4                  # (b,1) int32 lane-padded block
        tab_b = 2 * k_pad * emb_vmem * 4       # resident table buffers
        onehot_b = b * k_pad * 4               # in-kernel one-hot temporary
        res_b = b * emb_vmem * 4               # matmul result staging
        return out_b + z_b + tab_b + onehot_b + res_b

    headroom = 6 * 1024 * 1024                 # Mosaic internal scratch / spills
    budget = vmem_limit - headroom

    bn_cap = max(_round_up(block_atoms, 8), 8)
    while bn_cap > 8 and _tile_vmem_bytes(bn_cap) > budget:
        bn_cap = max(_round_up(bn_cap // 2, 8), 8)

    # Balanced grid for v7x's two TensorCores: >= 2 steps when there is enough
    # work, and an even step count when the grid is short.
    steps = _cdiv(n_atoms, bn_cap)
    if steps == 1 and n_atoms > 8:
        steps = 2
    elif 1 < steps < 8 and steps % 2 == 1:
        steps += 1
    bn = min(bn_cap, max(_round_up(_cdiv(n_atoms, steps), 8), 8))
    grid = (_cdiv(n_atoms, bn),)

    # ---- pallas_call -----------------------------------------------------------
    # No wrapper padding of Z and no post-kernel slicing: out_shape is the exact
    # (n_atoms, emb_size) array; the ragged last block's writeback is masked by
    # Pallas and garbage indices it reads only affect discarded rows.
    # TODO(synk): for emb_size < 128 a lane-packing scheme (128//emb_size atoms
    # per 128-lane output row) would make stores fully lane-dense; the unpadded
    # layout used here already keeps HBM traffic at the minimum n*emb*4 bytes.
    z2d = Z.astype(jnp.int32).reshape(n_atoms, 1)

    cost = pl.CostEstimate(
        flops=2 * n_atoms * k_pad * emb_size,
        transcendentals=0,
        bytes_accessed=(n_atoms * emb_size * 4      # output
                        + k_pad * emb_size * 4      # table
                        + n_atoms * 4),             # indices
    )

    def _call(precision):
        kernel = functools.partial(_atom_embedding_kernel, precision=precision)
        return pl.pallas_call(
            kernel,
            out_shape=jax.ShapeDtypeStruct((n_atoms, emb_size), table.dtype),
            grid_spec=pltpu.PrefetchScalarGridSpec(
                num_scalar_prefetch=0,
                grid=grid,
                in_specs=[
                    # block of atom indices
                    pl.BlockSpec((bn, 1), lambda i: (i, 0)),
                    # full (K-padded) table; constant index_map -> no re-DMA
                    # between grid steps.  (pipeline_mode=pl.Buffered(1) would
                    # also drop its redundant second buffer; omitted for
                    # portability — the second buffer is accounted for in the
                    # VMEM estimate above.)
                    pl.BlockSpec((k_pad, emb_size), lambda i: (0, 0)),
                ],
                out_specs=pl.BlockSpec((bn, emb_size), lambda i: (i, 0)),
            ),
            compiler_params=pltpu.CompilerParams(
                dimension_semantics=("parallel",),
                vmem_limit_bytes=vmem_limit,
            ),
            cost_estimate=cost,
        )(z2d, table_k)

    try:
        # Pin matmul precision so a global default_matmul_precision change
        # cannot truncate the f32 gather to bf16.
        return _call(jax.lax.Precision.HIGHEST)
    except Exception:
        # Some jax versions reject non-default precision in Mosaic lowering;
        # the default f32 x f32 MXU path is exact as well.
        return _call(None)


if __name__ == "__main__":
    def run_case(n_atoms, num_elements, emb_size, key):
        k_w, k_z = jax.random.split(key)
        # torch.nn.init.uniform_(weight, a=-sqrt(3), b=sqrt(3))
        bound = math.sqrt(3.0)
        table = jax.random.uniform(
            k_w, (num_elements, emb_size), dtype=jnp.float32,
            minval=-bound, maxval=bound,
        )
        # atomic numbers, 1-based as in the PyTorch module's forward (Z - 1)
        Z = jax.random.randint(k_z, (n_atoms,), 1, num_elements + 1,
                               dtype=jnp.int32)
        h = jax.block_until_ready(atom_embedding(Z, table))
        h_ref = table[Z - 1]
        assert h.shape == (n_atoms, emb_size)
        assert jnp.allclose(h, h_ref, atol=1e-6), "mismatch vs reference gather"

    key = jax.random.PRNGKey(0)
    k1, k2 = jax.random.split(key)
    # narrow embedding (<128), ragged atom tail, 2-step grid
    run_case(37, 16, 32, k1)
    # lane-dense embedding (multiple of 128), ragged tail
    run_case(50, 100, 128, k2)
    print("KERNEL_OK")
</pallas_src>

<mosaic_0001>
module attributes {stable_mosaic.version = 11 : i64} {
  func.func @_atom_embedding_kernel(%arg0: i32, %arg1: memref<24x1xi32, #tpu.memory_space<vmem>>, %arg2: memref<128x32xf32, #tpu.memory_space<vmem>>, %arg3: memref<24x32xf32, #tpu.memory_space<vmem>>) attributes {dimension_semantics = [#tpu.dimension_semantics<parallel>], iteration_bounds = array<i64: 2>, scalar_prefetch = 0 : i64, scratch_operands = 0 : i64, tpu.core_type = #tpu.core_type<tc>, window_params = [{transform_indices = @transform_0, window_bounds = array<i64: 24, 1>}, {pipeline_mode = #tpu.pipeline_mode<synchronous>, transform_indices = @transform_1, window_bounds = array<i64: 128, 32>}, {transform_indices = @transform_2, window_bounds = array<i64: 24, 32>}]} {
    %c0 = arith.constant 0 : index
    %c0_0 = arith.constant 0 : index
    %0 = vector.load %arg1[%c0, %c0_0] : memref<24x1xi32, #tpu.memory_space<vmem>>, vector<24x1xi32>
    %c1_i32 = arith.constant 1 : i32
    %1 = vector.broadcast %c1_i32 : i32 to vector<24x1xi32>
    %2 = arith.subi %0, %1 : vector<24x1xi32>
    %3 = tpu.iota {dimensions = array<i32: 1>} : vector<24x128xi32>
    %4 = vector.broadcast %2 : vector<24x1xi32> to vector<24x128xi32>
    %5 = arith.cmpi eq, %3, %4 : vector<24x128xi32>
    %6 = arith.extui %5 : vector<24x128xi1> to vector<24x128xi32>
    %7 = arith.sitofp %6 : vector<24x128xi32> to vector<24x128xf32>
    %c0_1 = arith.constant 0 : index
    %c0_2 = arith.constant 0 : index
    %8 = vector.load %arg2[%c0_1, %c0_2] : memref<128x32xf32, #tpu.memory_space<vmem>>, vector<128x32xf32>
    %cst = arith.constant dense<0.000000e+00> : vector<24x32xf32>
    %9 = tpu.matmul %7, %8, %cst {dimension_numbers = #tpu.dot_dimension_numbers<[1], [0], [0], [1], [0, 0, 1, 1], [], []>, precision = #tpu.contract_precision<fp32>} : vector<24x128xf32>, vector<128x32xf32>, vector<24x32xf32> -> vector<24x32xf32>
    %c0_3 = arith.constant 0 : index
    %c0_4 = arith.constant 0 : index
    %10 = vector.load %arg3[%c0_3, %c0_4] : memref<24x32xf32, #tpu.memory_space<vmem>>, vector<24x32xf32>
    tpu.vector_store %arg3[%c0_3, %c0_4], %9 {strides = array<i32>} : memref<24x32xf32, #tpu.memory_space<vmem>>, vector<24x32xf32>,
    return
  }
  func.func @transform_0(%arg0: i32) -> (i32, i32) {
    %c0_i32 = arith.constant 0 : i32
    %c0_i32_0 = arith.constant 0 : i32
    return %arg0, %c0_i32 : i32, i32
  }
  func.func @transform_1(%arg0: i32) -> (i32, i32) {
    %c0_i32 = arith.constant 0 : i32
    %c0_i32_0 = arith.constant 0 : i32
    %c0_i32_1 = arith.constant 0 : i32
    return %c0_i32, %c0_i32_0 : i32, i32
  }
  func.func @transform_2(%arg0: i32) -> (i32, i32) {
    %c0_i32 = arith.constant 0 : i32
    %c0_i32_0 = arith.constant 0 : i32
    return %arg0, %c0_i32 : i32, i32
  }
}

module attributes {stable_mosaic.version = 11 : i64} {
  func.func @_atom_embedding_kernel(%arg0: i32, %arg1: memref<24x1xi32, #tpu.memory_space<vmem>>, %arg2: memref<128x32xf32, #tpu.memory_space<vmem>>, %arg3: memref<24x32xf32, #tpu.memory_space<vmem>>) attributes {dimension_semantics = [#tpu.dimension_semantics<parallel>], iteration_bounds = array<i64: 2>, scalar_prefetch = 0 : i64, scratch_operands = 0 : i64, tpu.core_type = #tpu.core_type<tc>, window_params = [{transform_indices = @transform_0, window_bounds = array<i64: 24, 1>}, {pipeline_mode = #tpu.pipeline_mode<synchronous>, transform_indices = @transform_1, window_bounds = array<i64: 128, 32>}, {transform_indices = @transform_2, window_bounds = array<i64: 24, 32>}]} {
    %c0 = arith.constant 0 : index
    %c0_0 = arith.constant 0 : index
    %0 = vector.load %arg1[%c0, %c0_0] : memref<24x1xi32, #tpu.memory_space<vmem>>, vector<24x1xi32>
    %c1_i32 = arith.constant 1 : i32
    %1 = vector.broadcast %c1_i32 : i32 to vector<24x1xi32>
    %2 = arith.subi %0, %1 : vector<24x1xi32>
    %3 = tpu.iota {dimensions = array<i32: 1>} : vector<24x128xi32>
    %4 = vector.broadcast %2 : vector<24x1xi32> to vector<24x128xi32>
    %5 = arith.cmpi eq, %3, %4 : vector<24x128xi32>
    %6 = arith.extui %5 : vector<24x128xi1> to vector<24x128xi32>
    %7 = arith.sitofp %6 : vector<24x128xi32> to vector<24x128xf32>
    %c0_1 = arith.constant 0 : index
    %c0_2 = arith.constant 0 : index
    %8 = vector.load %arg2[%c0_1, %c0_2] : memref<128x32xf32, #tpu.memory_space<vmem>>, vector<128x32xf32>
    %cst = arith.constant dense<0.000000e+00> : vector<24x32xf32>
    %9 = tpu.matmul %7, %8, %cst {dimension_numbers = #tpu.dot_dimension_numbers<[1], [0], [0], [1], [0, 0, 1, 1], [], []>} : vector<24x128xf32>, vector<128x32xf32>, vector<24x32xf32> -> vector<24x32xf32>
    %c0_3 = arith.constant 0 : index
    %c0_4 = arith.constant 0 : index
    %10 = vector.load %arg3[%c0_3, %c0_4] : memref<24x32xf32, #tpu.memory_space<vmem>>, vector<24x32xf32>
    tpu.vector_store %arg3[%c0_3, %c0_4], %9 {strides = array<i32>} : memref<24x32xf32, #tpu.memory_space<vmem>>, vector<24x32xf32>,
    return
  }
  func.func @transform_0(%arg0: i32) -> (i32, i32) {
    %c0_i32 = arith.constant 0 : i32
    %c0_i32_0 = arith.constant 0 : i32
    return %arg0, %c0_i32 : i32, i32
  }
  func.func @transform_1(%arg0: i32) -> (i32, i32) {
    %c0_i32 = arith.constant 0 : i32
    %c0_i32_0 = arith.constant 0 : i32
    %c0_i32_1 = arith.constant 0 : i32
    return %c0_i32, %c0_i32_0 : i32, i32
  }
  func.func @transform_2(%arg0: i32) -> (i32, i32) {
    %c0_i32 = arith.constant 0 : i32
    %c0_i32_0 = arith.constant 0 : i32
    return %arg0, %c0_i32 : i32, i32
  }
}

</mosaic_0001>

<llo_original>
// kernel: tpu_custom_call.1
$region0: #{tpu_custom_call.1}
  #allocation0 [shape = 'u32[]', space=smem, size = 0x4, offset = 0x4, fixed_abs, tag = 'smem constant byte address 0x4 - core index']
  #allocation1 [shape = 'u32[144,128]{1,0:T(1,128)}', space=vmem, size = 0x12000, scoped, tag = 'internal scratch']
  %s0 = inlined_call_operand.vmem [shape: s32[37,1], index: 0, kind: input, shape index: {}]
  %s1 = inlined_call_operand.vmem [shape: f32[128,32], index: 1, kind: input, shape index: {}]
  %s2 = inlined_call_operand.vmem [shape: f32[37,32], index: 2, kind: output, shape index: {}]
  %s3 = sld [smem:[#allocation0]]
  $region89: #{tpu_custom_call.1} parent=0
    _
  %s5 = ssub.s32 1, %s3
  %s6 = scalar_select 0, %s5, %s3
  $region1: #{tpu_custom_call.1} parent=0
    #allocation2 [shape = 'u8[24576]{0}', space=vmem, size = 0x6000, scoped, tag = 'output window, operand 0']
    loop: start=0, step=1, limit=4
    $region2: #{tpu_custom_call.1} parent=1 // loop_pre_header
      _
    $region3: #{tpu_custom_call.1} parent=1 // loop_header
      %s8 = sphi 0, %s12
      %p9 = scmp.ge.s32.totalorder %s8, 4
      %s18 = sphi 0, %s20
      %s21 = sphi 0, %s18
      %s22 = sphi 0, %s21
      %s38 = sphi 0, %s22
      %s42 = sphi 0, %s42
      %s44 = sphi 0, %s42
      %s45 = sphi 0, %s44
      %s59 = sphi 0, %s45
      %s65 = sphi 0, %s67
      %s68 = sphi 0, %s65
      %s69 = sphi 0, %s68
      %s85 = sphi 0, %s69
    $region4: #{tpu_custom_call.1} parent=1 // loop_header_branch
      %11 = sbr.rel (%p9) target = $region8
    $region5: #{tpu_custom_call.1} parent=1 // loop_body
      %s13 = ssub.s32 %s8, 1
      %s14 = ssub.s32 %s8, 2
      %s15 = sadd.s32 %s8, 1
      %s16 = ssub.s32 %s8, %s15
      %p17 = scmp.eq.s32.totalorder %s16, 0
      %s19 = sadd.s32 %s18, 1
      %s20 = scalar_select %p17, %s18, %s19
      %p23 = pneg %p17
      %p24 = scmp.eq.s32.totalorder %s8, 1
      %p25 = por %p23, %p24
      %p26 = scmp.ne.s32.totalorder %s18, %s21
      %p27 = scmp.eq.s32.totalorder %s8, 0
      %p28 = por %p26, %p27
      %p29 = scmp.ne.s32.totalorder %s18, %s21
      %p30 = scmp.eq.s32.totalorder %s13, 1
      %p31 = por %p29, %p30
      %p32 = scmp.ne.s32.totalorder %s21, %s22
      %p33 = scmp.eq.s32.totalorder %s13, 0
      %p34 = por %p32, %p33
      %p35 = scmp.ne.s32.totalorder %s21, %s22
      %p36 = scmp.eq.s32.totalorder %s14, 1
      %p37 = por %p35, %p36
      %p39 = scmp.ne.s32.totalorder %s22, %s38
      %p40 = scmp.eq.s32.totalorder %s14, 0
      %p41 = por %p39, %p40
      %s43 = sadd.s32 %s42, 1
      %p46 = scmp.eq.s32.totalorder %s8, 1
      %p47 = scmp.ne.s32.totalorder %s42, %s44
      %p48 = scmp.eq.s32.totalorder %s8, 0
      %p49 = por %p47, %p48
      %p50 = scmp.ne.s32.totalorder %s42, %s44
      %p51 = scmp.eq.s32.totalorder %s13, 1
      %p52 = por %p50, %p51
      %p53 = scmp.ne.s32.totalorder %s44, %s45
      %p54 = scmp.eq.s32.totalorder %s13, 0
      %p55 = por %p53, %p54
      %p56 = scmp.ne.s32.totalorder %s44, %s45
      %p57 = scmp.eq.s32.totalorder %s14, 1
      %p58 = por %p56, %p57
      %p60 = scmp.ne.s32.totalorder %s45, %s59
      %p61 = scmp.eq.s32.totalorder %s14, 0
      %p62 = por %p60, %p61
      %s63 = ssub.s32 %s8, %s15
      %p64 = scmp.eq.s32.totalorder %s63, 0
      %s66 = sadd.s32 %s65, 1
      %s67 = scalar_select %p64, %s65, %s66
      %p70 = pneg %p64
      %p71 = scmp.eq.s32.totalorder %s8, 1
      %p72 = por %p70, %p71
      %p73 = scmp.ne.s32.totalorder %s65, %s68
      %p74 = scmp.eq.s32.totalorder %s8, 0
      %p75 = por %p73, %p74
      %p76 = scmp.ne.s32.totalorder %s65, %s68
      %p77 = scmp.eq.s32.totalorder %s13, 1
      %p78 = por %p76, %p77
      %p79 = scmp.ne.s32.totalorder %s68, %s69
      %p80 = scmp.eq.s32.totalorder %s13, 0
      %p81 = por %p79, %p80
      %p82 = scmp.ne.s32.totalorder %s68, %s69
      %p83 = scmp.eq.s32.totalorder %s14, 1
      %p84 = por %p82, %p83
      %p86 = scmp.ne.s32.totalorder %s69, %s85
      %p87 = scmp.eq.s32.totalorder %s14, 0
      %p88 = por %p86, %p87
      %p89 = scmp.le.s32.totalorder 1, %s8
      %p90 = scmp.lt.s32.totalorder %s8, 3
      %p91 = pnand %p89, %p90
      %p92 = pneg %p91
      // Predicated region
      $region9: #{tpu_custom_call.1} parent=5 // pred_check
        _
      $region10: #{tpu_custom_call.1} parent=5 // pred_check_branch
        %94 = sbr.rel (%p91) target = $region12
      $region11: #{tpu_custom_call.1} parent=5 // pred_region
        %s95 = ssub.s32 %s8, 1
        // Predicated region
        $region13: #{tpu_custom_call.1} parent=11 // pred_check
          %p96 = pneg %p55
        $region14: #{tpu_custom_call.1} parent=11 // pred_check_branch
          %98 = sbr.rel (%p96) target = $region16
        $region15: #{tpu_custom_call.1} parent=11 // pred_region
          _
        $region16: #{tpu_custom_call.1} parent=11 // pred_fallthru
          _
      $region12: #{tpu_custom_call.1} parent=5 // pred_fallthru
        _
      %p99 = scmp.lt.s32.totalorder %s8, 2
      // Predicated region
      $region17: #{tpu_custom_call.1} parent=5 // pred_check
        %p100 = pneg %p99
      $region18: #{tpu_custom_call.1} parent=5 // pred_check_branch
        %102 = sbr.rel (%p100) target = $region20
      $region19: #{tpu_custom_call.1} parent=5 // pred_region
        // Predicated region
        $region21: #{tpu_custom_call.1} parent=19 // pred_check
          %p103 = pneg %p28
        $region22: #{tpu_custom_call.1} parent=19 // pred_check_branch
          %105 = sbr.rel (%p103) target = $region24
        $region23: #{tpu_custom_call.1} parent=19 // pred_region
          %s106 = smul.u32 3, %s8
          %s107 = ssub.s32 5, %s106
          %p108 = scmp.lt.s32.totalorder %s107, 3
          %s109 = scalar_select %p108, %s107, 3
          %s110 = smul.u32 128, %s109
          %p111 = scmp.lt.s32.totalorder %s106, 4
          %s112 = scalar_select %p111, %s106, 4
          %s113 = smul.addr %s112, 8
          %s114 = scalar_lea.vmem %s0, %s113
          %s115 = smul.u32 3, %s8
          %s116 = ssub.s32 5, %s115
          %p117 = scmp.lt.s32.totalorder %s116, 3
          %s118 = scalar_select %p117, %s116, 3
          %s119 = smul.u32 128, %s118
        $region24: #{tpu_custom_call.1} parent=19 // pred_fallthru
          _
      $region20: #{tpu_custom_call.1} parent=5 // pred_fallthru
        _
      %p120 = scmp.le.s32.totalorder 1, %s8
      %p121 = scmp.lt.s32.totalorder %s8, 3
      %p122 = pnand %p120, %p121
      %p123 = pneg %p122
      // Predicated region
      $region25: #{tpu_custom_call.1} parent=5 // pred_check
        _
      $region26: #{tpu_custom_call.1} parent=5 // pred_check_branch
        %125 = sbr.rel (%p122) target = $region28
      $region27: #{tpu_custom_call.1} parent=5 // pred_region
        %s126 = ssub.s32 %s8, 1
        %s127 = smul.u32 3, %s13
        %s128 = ssub.s32 5, %s127
        %p129 = scmp.lt.s32.totalorder %s128, 3
        %s130 = scalar_select %p129, %s128, 3
        %s131 = smul.u32 128, %s130
        %p132 = scmp.lt.s32.totalorder %s127, 4
        %s133 = scalar_select %p132, %s127, 4
        %s134 = smul.addr %s133, 8
        %s135 = scalar_lea.vmem %s0, %s134
        %p136 = pneg %p34
        %p137 = pneg %p31
        %p138 = pneg %p55
        %p139 = pneg %p52
        %p140 = pneg %p81
        %p141 = pneg %p78
        %s142 = sand.u32 %s68, 1
        %s143 = sand.u32 %s68, 1
        %s144 = smul.addr %s143, 24
        %s145 = scalar_lea.vmem [#allocation2], %s144
        %s146 = smul.u32 3, %s13
        %s147 = ssub.s32 5, %s146
        %p148 = scmp.lt.s32.totalorder %s147, 3
        %s149 = scalar_select %p148, %s147, 3
        %s150 = smul.u32 128, %s149
        %p151 = scmp.lt.s32.totalorder %s146, 4
        %s152 = scalar_select %p151, %s146, 4
        %s153 = smul.addr %s152, 8
        %s154 = scalar_lea.vmem %s0, %s153
        %s155 = smul.u32 3, %s13
        %s156 = ssub.s32 5, %s155
        %p157 = scmp.lt.s32.totalorder %s156, 3
        %s158 = scalar_select %p157, %s156, 3
        %s159 = smul.u32 128, %s158
        %s160 = smul.u32 3, %s13
        %s161 = ssub.s32 5, %s160
        %p162 = scmp.lt.s32.totalorder %s161, 3
        %s163 = scalar_select %p162, %s161, 3
        %s164 = smul.u32 128, %s163
        %v165 = vld [vmem:[%s154] sm:$0xff]
        %v166 = vld [vmem:[%s154 + $0x8] sm:$0xff]
        %v167 = vld [vmem:[%s154 + $0x10] sm:$0xff]
        %v168 = vsub.s32 %v165, 1
        %v169 = vsub.s32 %v166, 1
        %v170 = vsub.s32 %v167, 1
        %v171 = vlaneseq
        %v172 = vand.u32 %v171, 127
        %173 = vset.pattern.permute.xlu0 0
        %174 = vperm.xlu0 %173, %v168
        %v175 = vpop.permute.xlu0 %174
        %176 = vset.pattern.permute.xlu0 0
        %177 = vperm.xlu0 %176, %v169
        %v178 = vpop.permute.xlu0 %177
        %179 = vset.pattern.permute.xlu0 0
        %180 = vperm.xlu0 %179, %v170
        %v181 = vpop.permute.xlu0 %180
        %vm182 = vcmp.eq.s32.totalorder %v172, %v175
        %vm183 = vcmp.eq.s32.totalorder %v172, %v178
        %vm184 = vcmp.eq.s32.totalorder %v172, %v181
        %v185 = vsel %vm182, 1, 0
        %v186 = vsel %vm183, 1, 0
        %v187 = vsel %vm184, 1, 0
        %v188 = vcvt.s32.f32 %v185
        %v189 = vcvt.s32.f32 %v186
        %v190 = vcvt.s32.f32 %v187
        %v191 = vld [vmem:[%s1] sm:$0xff]
        %v192 = vld [vmem:[%s1 + $0x8] sm:$0xff]
        %v193 = vld [vmem:[%s1 + $0x10] sm:$0xff]
        %v194 = vld [vmem:[%s1 + $0x18] sm:$0xff]
        %v195 = vld [vmem:[%s1 + $0x20] sm:$0xff]
        %v196 = vld [vmem:[%s1 + $0x28] sm:$0xff]
        %v197 = vld [vmem:[%s1 + $0x30] sm:$0xff]
        %v198 = vld [vmem:[%s1 + $0x38] sm:$0xff]
        %v199 = vld [vmem:[%s1 + $0x40] sm:$0xff]
        %v200 = vld [vmem:[%s1 + $0x48] sm:$0xff]
        %v201 = vld [vmem:[%s1 + $0x50] sm:$0xff]
        %v202 = vld [vmem:[%s1 + $0x58] sm:$0xff]
        %v203 = vld [vmem:[%s1 + $0x60] sm:$0xff]
        %v204 = vld [vmem:[%s1 + $0x68] sm:$0xff]
        %v205 = vld [vmem:[%s1 + $0x70] sm:$0xff]
        %v206 = vld [vmem:[%s1 + $0x78] sm:$0xff]
        %207 = vmatprep.subr.mxu0 0.0
        %v208 = vand.u32 %v191, 4294901760
        %209 = vmatpush1.msra.mxu0 %v208
        %210 = vmatprep.subr.mxu0 0.0
        %v211 = vand.u32 %v192, 4294901760
        %212 = vmatpush1.msra.mxu0 %v211
        %213 = vmatprep.subr.mxu0 0.0
        %v214 = vand.u32 %v193, 4294901760
        %215 = vmatpush1.msra.mxu0 %v214
        %216 = vmatprep.subr.mxu0 0.0
        %v217 = vand.u32 %v194, 4294901760
        %218 = vmatpush1.msra.mxu0 %v217
        %219 = vmatprep.subr.mxu0 0.0
        %v220 = vand.u32 %v195, 4294901760
        %221 = vmatpush1.msra.mxu0 %v220
        %222 = vmatprep.subr.mxu0 0.0
        %v223 = vand.u32 %v196, 4294901760
        %224 = vmatpush1.msra.mxu0 %v223
        %225 = vmatprep.subr.mxu0 0.0
        %v226 = vand.u32 %v197, 4294901760
        %227 = vmatpush1.msra.mxu0 %v226
        %228 = vmatprep.subr.mxu0 0.0
        %v229 = vand.u32 %v198, 4294901760
        %230 = vmatpush1.msra.mxu0 %v229
        %231 = vmatprep.subr.mxu0 0.0
        %v232 = vand.u32 %v199, 4294901760
        %233 = vmatpush1.msra.mxu0 %v232
        %234 = vmatprep.subr.mxu0 0.0
        %v235 = vand.u32 %v200, 4294901760
        %236 = vmatpush1.msra.mxu0 %v235
        %237 = vmatprep.subr.mxu0 0.0
        %v238 = vand.u32 %v201, 4294901760
        %239 = vmatpush1.msra.mxu0 %v238
        %240 = vmatprep.subr.mxu0 0.0
        %v241 = vand.u32 %v202, 4294901760
        %242 = vmatpush1.msra.mxu0 %v241
        %243 = vmatprep.subr.mxu0 0.0
        %v244 = vand.u32 %v203, 4294901760
        %245 = vmatpush1.msra.mxu0 %v244
        %246 = vmatprep.subr.mxu0 0.0
        %v247 = vand.u32 %v204, 4294901760
        %248 = vmatpush1.msra.mxu0 %v247
        %249 = vmatprep.subr.mxu0 0.0
        %v250 = vand.u32 %v205, 4294901760
        %251 = vmatpush1.msra.mxu0 %v250
        %252 = vmatprep.subr.mxu0 0.0
        %v253 = vand.u32 %v206, 4294901760
        %254 = vmatpush1.msra.mxu0 %v253
        %255 = vmatprep.subr.mxu0 0.0
        %256 = vmatpush1.msra.mxu0 0.0
        %257 = vmatprep.subr.mxu0 0.0
        %258 = vmatpush1.msra.mxu0 0.0
        %259 = vmatprep.subr.mxu0 0.0
        %260 = vmatpush1.msra.mxu0 0.0
        %261 = vmatprep.subr.mxu0 0.0
        %262 = vmatpush1.msra.mxu0 0.0
        %263 = vmatprep.subr.mxu0 0.0
        %264 = vmatpush1.msra.mxu0 0.0
        %265 = vmatprep.subr.mxu0 0.0
        %266 = vmatpush1.msra.mxu0 0.0
        %267 = vmatprep.subr.mxu0 0.0
        %268 = vmatpush1.msra.mxu0 0.0
        %269 = vmatprep.subr.mxu0 0.0
        %270 = vmatpush1.msra.mxu0 0.0
        %271 = vmatprep.subr.mxu0 0.0
        %272 = vmatpush1.msra.mxu0 0.0
        %273 = vmatprep.subr.mxu0 0.0
        %274 = vmatpush1.msra.mxu0 0.0
        %275 = vmatprep.subr.mxu0 0.0
        %276 = vmatpush1.msra.mxu0 0.0
        %277 = vmatprep.subr.mxu0 0.0
        %278 = vmatpush1.msra.mxu0 0.0
        %279 = vmatprep.subr.mxu0 0.0
        %280 = vmatpush1.msra.mxu0 0.0
        %281 = vmatprep.subr.mxu0 0.0
        %282 = vmatpush1.msra.mxu0 0.0
        %283 = vmatprep.subr.mxu0 0.0
        %284 = vmatpush1.msra.mxu0 0.0
        %285 = vmatprep.subr.mxu0 0.0
        %286 = vmatpush1.msra.mxu0 0.0
        %287 = vmatprep.mubr.f32.mxu0 0.0
        %v288 = vand.u32 %v188, 4294901760
        %v289 = vsub.f32 %v188, %v288
        %v290 = vand.u32 %v289, 4294901760
        %v291 = vsub.f32 %v289, %v290
        %v292 = vand.u32 %v291, 4294901760
        %293 = vmatmul.mubr.f32.gmra.mrb[0].mxu0 %v292
        %v294 = vpop.f32.mrb[0].mxu0
        %v295 = vadd.f32 0.0, %v294
        %v296 = vpop.f32.mrb[0].mxu0
        %297 = vmatprep.mubr.f32.mxu0 0.0
        %v298 = vand.u32 %v189, 4294901760
        %v299 = vsub.f32 %v189, %v298
        %v300 = vand.u32 %v299, 4294901760
        %v301 = vsub.f32 %v299, %v300
        %v302 = vand.u32 %v301, 4294901760
        %303 = vmatmul.mubr.f32.gmra.mrb[0].mxu0 %v302
        %v304 = vpop.f32.mrb[0].mxu0
        %v305 = vadd.f32 0.0, %v304
        %v306 = vpop.f32.mrb[0].mxu0
        %307 = vmatprep.mubr.f32.mxu0 0.0
        %v308 = vand.u32 %v190, 4294901760
        %v309 = vsub.f32 %v190, %v308
        %v310 = vand.u32 %v309, 4294901760
        %v311 = vsub.f32 %v309, %v310
        %v312 = vand.u32 %v311, 4294901760
        %313 = vmatmul.mubr.f32.gmra.mrb[0].mxu0 %v312
        %v314 = vpop.f32.mrb[0].mxu0
        %v315 = vadd.f32 0.0, %v314
        %v316 = vpop.f32.mrb[0].mxu0
        %317 = vdwg.mxu0
        %318 = vmatprep.subr.mxu0 0.0
        %v319 = vand.u32 %v191, 4294901760
        %v320 = vsub.f32 %v191, %v319
        %v321 = vand.u32 %v320, 4294901760
        %v322 = vsub.f32 %v320, %v321
        %v323 = vand.u32 %v322, 4294901760
        %324 = vmatpush1.msra.mxu0 %v323
        %325 = vmatprep.subr.mxu0 0.0
        %v326 = vand.u32 %v192, 4294901760
        %v327 = vsub.f32 %v192, %v326
        %v328 = vand.u32 %v327, 4294901760
        %v329 = vsub.f32 %v327, %v328
        %v330 = vand.u32 %v329, 4294901760
        %331 = vmatpush1.msra.mxu0 %v330
        %332 = vmatprep.subr.mxu0 0.0
        %v333 = vand.u32 %v193, 4294901760
        %v334 = vsub.f32 %v193, %v333
        %v335 = vand.u32 %v334, 4294901760
        %v336 = vsub.f32 %v334, %v335
        %v337 = vand.u32 %v336, 4294901760
        %338 = vmatpush1.msra.mxu0 %v337
        %339 = vmatprep.subr.mxu0 0.0
        %v340 = vand.u32 %v194, 4294901760
        %v341 = vsub.f32 %v194, %v340
        %v342 = vand.u32 %v341, 4294901760
        %v343 = vsub.f32 %v341, %v342
        %v344 = vand.u32 %v343, 4294901760
        %345 = vmatpush1.msra.mxu0 %v344
        %346 = vmatprep.subr.mxu0 0.0
        %v347 = vand.u32 %v195, 4294901760
        %v348 = vsub.f32 %v195, %v347
        %v349 = vand.u32 %v348, 4294901760
        %v350 = vsub.f32 %v348, %v349
        %v351 = vand.u32 %v350, 4294901760
        %352 = vmatpush1.msra.mxu0 %v351
        %353 = vmatprep.subr.mxu0 0.0
        %v354 = vand.u32 %v196, 4294901760
        %v355 = vsub.f32 %v196, %v354
        %v356 = vand.u32 %v355, 4294901760
        %v357 = vsub.f32 %v355, %v356
        %v358 = vand.u32 %v357, 4294901760
        %359 = vmatpush1.msra.mxu0 %v358
        %360 = vmatprep.subr.mxu0 0.0
        %v361 = vand.u32 %v197, 4294901760
        %v362 = vsub.f32 %v197, %v361
        %v363 = vand.u32 %v362, 4294901760
        %v364 = vsub.f32 %v362, %v363
        %v365 = vand.u32 %v364, 4294901760
        %366 = vmatpush1.msra.mxu0 %v365
        %367 = vmatprep.subr.mxu0 0.0
        %v368 = vand.u32 %v198, 4294901760
        %v369 = vsub.f32 %v198, %v368
        %v370 = vand.u32 %v369, 4294901760
        %v371 = vsub.f32 %v369, %v370
        %v372 = vand.u32 %v371, 4294901760
        %373 = vmatpush1.msra.mxu0 %v372
        %374 = vmatprep.subr.mxu0 0.0
        %v375 = vand.u32 %v199, 4294901760
        %v376 = vsub.f32 %v199, %v375
        %v377 = vand.u32 %v376, 4294901760
        %v378 = vsub.f32 %v376, %v377
        %v379 = vand.u32 %v378, 4294901760
        %380 = vmatpush1.msra.mxu0 %v379
        %381 = vmatprep.subr.mxu0 0.0
        %v382 = vand.u32 %v200, 4294901760
        %v383 = vsub.f32 %v200, %v382
        %v384 = vand.u32 %v383, 4294901760
        %v385 = vsub.f32 %v383, %v384
        %v386 = vand.u32 %v385, 4294901760
        %387 = vmatpush1.msra.mxu0 %v386
        %388 = vmatprep.subr.mxu0 0.0
        %v389 = vand.u32 %v201, 4294901760
        %v390 = vsub.f32 %v201, %v389
        %v391 = vand.u32 %v390, 4294901760
        %v392 = vsub.f32 %v390, %v391
        %v393 = vand.u32 %v392, 4294901760
        %394 = vmatpush1.msra.mxu0 %v393
        %395 = vmatprep.subr.mxu0 0.0
        %v396 = vand.u32 %v202, 4294901760
        %v397 = vsub.f32 %v202, %v396
        %v398 = vand.u32 %v397, 4294901760
        %v399 = vsub.f32 %v397, %v398
        %v400 = vand.u32 %v399, 4294901760
        %401 = vmatpush1.msra.mxu0 %v400
        %402 = vmatprep.subr.mxu0 0.0
        %v403 = vand.u32 %v203, 4294901760
        %v404 = vsub.f32 %v203, %v403
        %v405 = vand.u32 %v404, 4294901760
        %v406 = vsub.f32 %v404, %v405
        %v407 = vand.u32 %v406, 4294901760
        %408 = vmatpush1.msra.mxu0 %v407
        %409 = vmatprep.subr.mxu0 0.0
        %v410 = vand.u32 %v204, 4294901760
        %v411 = vsub.f32 %v204, %v410
        %v412 = vand.u32 %v411, 4294901760
        %v413 = vsub.f32 %v411, %v412
        %v414 = vand.u32 %v413, 4294901760
        %415 = vmatpush1.msra.mxu0 %v414
        %416 = vmatprep.subr.mxu0 0.0
        %v417 = vand.u32 %v205, 4294901760
        %v418 = vsub.f32 %v205, %v417
        %v419 = vand.u32 %v418, 4294901760
        %v420 = vsub.f32 %v418, %v419
        %v421 = vand.u32 %v420, 4294901760
        %422 = vmatpush1.msra.mxu0 %v421
        %423 = vmatprep.subr.mxu0 0.0
        %v424 = vand.u32 %v206, 4294901760
        %v425 = vsub.f32 %v206, %v424
        %v426 = vand.u32 %v425, 4294901760
        %v427 = vsub.f32 %v425, %v426
        %v428 = vand.u32 %v427, 4294901760
        %429 = vmatpush1.msra.mxu0 %v428
        %430 = vmatprep.subr.mxu0 0.0
        %431 = vmatpush1.msra.mxu0 0.0
        %432 = vmatprep.subr.mxu0 0.0
        %433 = vmatpush1.msra.mxu0 0.0
        %434 = vmatprep.subr.mxu0 0.0
        %435 = vmatpush1.msra.mxu0 0.0
        %436 = vmatprep.subr.mxu0 0.0
        %437 = vmatpush1.msra.mxu0 0.0
        %438 = vmatprep.subr.mxu0 0.0
        %439 = vmatpush1.msra.mxu0 0.0
        %440 = vmatprep.subr.mxu0 0.0
        %441 = vmatpush1.msra.mxu0 0.0
        %442 = vmatprep.subr.mxu0 0.0
        %443 = vmatpush1.msra.mxu0 0.0
        %444 = vmatprep.subr.mxu0 0.0
        %445 = vmatpush1.msra.mxu0 0.0
        %446 = vmatprep.subr.mxu0 0.0
        %447 = vmatpush1.msra.mxu0 0.0
        %448 = vmatprep.subr.mxu0 0.0
        %449 = vmatpush1.msra.mxu0 0.0
        %450 = vmatprep.subr.mxu0 0.0
        %451 = vmatpush1.msra.mxu0 0.0
        %452 = vmatprep.subr.mxu0 0.0
        %453 = vmatpush1.msra.mxu0 0.0
        %454 = vmatprep.subr.mxu0 0.0
        %455 = vmatpush1.msra.mxu0 0.0
        %456 = vmatprep.subr.mxu0 0.0
        %457 = vmatpush1.msra.mxu0 0.0
        %458 = vmatprep.subr.mxu0 0.0
        %459 = vmatpush1.msra.mxu0 0.0
        %460 = vmatprep.subr.mxu0 0.0
        %461 = vmatpush1.msra.mxu0 0.0
        %462 = vmatprep.mubr.f32.mxu0 0.0
        %v463 = vand.u32 %v188, 4294901760
        %464 = vmatmul.mubr.f32.gmra.mrb[0].mxu0 %v463
        %v465 = vpop.f32.mrb[0].mxu0
        %v466 = vadd.f32 %v295, %v465
        %v467 = vpop.f32.mrb[0].mxu0
        %468 = vmatprep.mubr.f32.mxu0 0.0
        %v469 = vand.u32 %v189, 4294901760
        %470 = vmatmul.mubr.f32.gmra.mrb[0].mxu0 %v469
        %v471 = vpop.f32.mrb[0].mxu0
        %v472 = vadd.f32 %v305, %v471
        %v473 = vpop.f32.mrb[0].mxu0
        %474 = vmatprep.mubr.f32.mxu0 0.0
        %v475 = vand.u32 %v190, 4294901760
        %476 = vmatmul.mubr.f32.gmra.mrb[0].mxu0 %v475
        %v477 = vpop.f32.mrb[0].mxu0
        %v478 = vadd.f32 %v315, %v477
        %v479 = vpop.f32.mrb[0].mxu0
        %480 = vdwg.mxu0
        %481 = vmatprep.subr.mxu0 0.0
        %v482 = vand.u32 %v191, 4294901760
        %v483 = vsub.f32 %v191, %v482
        %484 = vmatpush1.msra.mxu0 %v483
        %485 = vmatprep.subr.mxu0 0.0
        %v486 = vand.u32 %v192, 4294901760
        %v487 = vsub.f32 %v192, %v486
        %488 = vmatpush1.msra.mxu0 %v487
        %489 = vmatprep.subr.mxu0 0.0
        %v490 = vand.u32 %v193, 4294901760
        %v491 = vsub.f32 %v193, %v490
        %492 = vmatpush1.msra.mxu0 %v491
        %493 = vmatprep.subr.mxu0 0.0
        %v494 = vand.u32 %v194, 4294901760
        %v495 = vsub.f32 %v194, %v494
        %496 = vmatpush1.msra.mxu0 %v495
        %497 = vmatprep.subr.mxu0 0.0
        %v498 = vand.u32 %v195, 4294901760
        %v499 = vsub.f32 %v195, %v498
        %500 = vmatpush1.msra.mxu0 %v499
        %501 = vmatprep.subr.mxu0 0.0
        %v502 = vand.u32 %v196, 4294901760
        %v503 = vsub.f32 %v196, %v502
        %504 = vmatpush1.msra.mxu0 %v503
        %505 = vmatprep.subr.mxu0 0.0
        %v506 = vand.u32 %v197, 4294901760
        %v507 = vsub.f32 %v197, %v506
        %508 = vmatpush1.msra.mxu0 %v507
        %509 = vmatprep.subr.mxu0 0.0
        %v510 = vand.u32 %v198, 4294901760
        %v511 = vsub.f32 %v198, %v510
        %512 = vmatpush1.msra.mxu0 %v511
        %513 = vmatprep.subr.mxu0 0.0
        %v514 = vand.u32 %v199, 4294901760
        %v515 = vsub.f32 %v199, %v514
        %516 = vmatpush1.msra.mxu0 %v515
        %517 = vmatprep.subr.mxu0 0.0
        %v518 = vand.u32 %v200, 4294901760
        %v519 = vsub.f32 %v200, %v518
        %520 = vmatpush1.msra.mxu0 %v519
        %521 = vmatprep.subr.mxu0 0.0
        %v522 = vand.u32 %v201, 4294901760
        %v523 = vsub.f32 %v201, %v522
        %524 = vmatpush1.msra.mxu0 %v523
        %525 = vmatprep.subr.mxu0 0.0
        %v526 = vand.u32 %v202, 4294901760
        %v527 = vsub.f32 %v202, %v526
        %528 = vmatpush1.msra.mxu0 %v527
        %529 = vmatprep.subr.mxu0 0.0
        %v530 = vand.u32 %v203, 4294901760
        %v531 = vsub.f32 %v203, %v530
        %532 = vmatpush1.msra.mxu0 %v531
        %533 = vmatprep.subr.mxu0 0.0
        %v534 = vand.u32 %v204, 4294901760
        %v535 = vsub.f32 %v204, %v534
        %536 = vmatpush1.msra.mxu0 %v535
        %537 = vmatprep.subr.mxu0 0.0
        %v538 = vand.u32 %v205, 4294901760
        %v539 = vsub.f32 %v205, %v538
        %540 = vmatpush1.msra.mxu0 %v539
        %541 = vmatprep.subr.mxu0 0.0
        %v542 = vand.u32 %v206, 4294901760
        %v543 = vsub.f32 %v206, %v542
        %544 = vmatpush1.msra.mxu0 %v543
        %545 = vmatprep.subr.mxu0 0.0
        %546 = vmatpush1.msra.mxu0 0.0
        %547 = vmatprep.subr.mxu0 0.0
        %548 = vmatpush1.msra.mxu0 0.0
        %549 = vmatprep.subr.mxu0 0.0
        %550 = vmatpush1.msra.mxu0 0.0
        %551 = vmatprep.subr.mxu0 0.0
        %552 = vmatpush1.msra.mxu0 0.0
        %553 = vmatprep.subr.mxu0 0.0
        %554 = vmatpush1.msra.mxu0 0.0
        %555 = vmatprep.subr.mxu0 0.0
        %556 = vmatpush1.msra.mxu0 0.0
        %557 = vmatprep.subr.mxu0 0.0
        %558 = vmatpush1.msra.mxu0 0.0
        %559 = vmatprep.subr.mxu0 0.0
        %560 = vmatpush1.msra.mxu0 0.0
        %561 = vmatprep.subr.mxu0 0.0
        %562 = vmatpush1.msra.mxu0 0.0
        %563 = vmatprep.subr.mxu0 0.0
        %564 = vmatpush1.msra.mxu0 0.0
        %565 = vmatprep.subr.mxu0 0.0
        %566 = vmatpush1.msra.mxu0 0.0
        %567 = vmatprep.subr.mxu0 0.0
        %568 = vmatpush1.msra.mxu0 0.0
        %569 = vmatprep.subr.mxu0 0.0
        %570 = vmatpush1.msra.mxu0 0.0
        %571 = vmatprep.subr.mxu0 0.0
        %572 = vmatpush1.msra.mxu0 0.0
        %573 = vmatprep.subr.mxu0 0.0
        %574 = vmatpush1.msra.mxu0 0.0
        %575 = vmatprep.subr.mxu0 0.0
        %576 = vmatpush1.msra.mxu0 0.0
        %577 = vmatprep.mubr.f32.mxu0 0.0
        %v578 = vand.u32 %v188, 4294901760
        %v579 = vsub.f32 %v188, %v578
        %580 = vmatmul.mubr.f32.gmra.mrb[0].mxu0 %v579
        %v581 = vpop.f32.mrb[0].mxu0
        %v582 = vadd.f32 %v466, %v581
        %v583 = vpop.f32.mrb[0].mxu0
        %584 = vmatprep.mubr.f32.mxu0 0.0
        %v585 = vand.u32 %v189, 4294901760
        %v586 = vsub.f32 %v189, %v585
        %587 = vmatmul.mubr.f32.gmra.mrb[0].mxu0 %v586
        %v588 = vpop.f32.mrb[0].mxu0
        %v589 = vadd.f32 %v472, %v588
        %v590 = vpop.f32.mrb[0].mxu0
        %591 = vmatprep.mubr.f32.mxu0 0.0
        %v592 = vand.u32 %v190, 4294901760
        %v593 = vsub.f32 %v190, %v592
        %594 = vmatmul.mubr.f32.gmra.mrb[0].mxu0 %v593
        %v595 = vpop.f32.mrb[0].mxu0
        %v596 = vadd.f32 %v478, %v595
        %v597 = vpop.f32.mrb[0].mxu0
        %598 = vdwg.mxu0
        %599 = vmatprep.subr.mxu0 0.0
        %v600 = vand.u32 %v191, 4294901760
        %601 = vmatpush1.msra.mxu0 %v600
        %602 = vmatprep.subr.mxu0 0.0
        %v603 = vand.u32 %v192, 4294901760
        %604 = vmatpush1.msra.mxu0 %v603
        %605 = vmatprep.subr.mxu0 0.0
        %v606 = vand.u32 %v193, 4294901760
        %607 = vmatpush1.msra.mxu0 %v606
        %608 = vmatprep.subr.mxu0 0.0
        %v609 = vand.u32 %v194, 4294901760
        %610 = vmatpush1.msra.mxu0 %v609
        %611 = vmatprep.subr.mxu0 0.0
        %v612 = vand.u32 %v195, 4294901760
        %613 = vmatpush1.msra.mxu0 %v612
        %614 = vmatprep.subr.mxu0 0.0
        %v615 = vand.u32 %v196, 4294901760
        %616 = vmatpush1.msra.mxu0 %v615
        %617 = vmatprep.subr.mxu0 0.0
        %v618 = vand.u32 %v197, 4294901760
        %619 = vmatpush1.msra.mxu0 %v618
        %620 = vmatprep.subr.mxu0 0.0
        %v621 = vand.u32 %v198, 4294901760
        %622 = vmatpush1.msra.mxu0 %v621
        %623 = vmatprep.subr.mxu0 0.0
        %v624 = vand.u32 %v199, 4294901760
        %625 = vmatpush1.msra.mxu0 %v624
        %626 = vmatprep.subr.mxu0 0.0
        %v627 = vand.u32 %v200, 4294901760
        %628 = vmatpush1.msra.mxu0 %v627
        %629 = vmatprep.subr.mxu0 0.0
        %v630 = vand.u32 %v201, 4294901760
        %631 = vmatpush1.msra.mxu0 %v630
        %632 = vmatprep.subr.mxu0 0.0
        %v633 = vand.u32 %v202, 4294901760
        %634 = vmatpush1.msra.mxu0 %v633
        %635 = vmatprep.subr.mxu0 0.0
        %v636 = vand.u32 %v203, 4294901760
        %637 = vmatpush1.msra.mxu0 %v636
        %638 = vmatprep.subr.mxu0 0.0
        %v639 = vand.u32 %v204, 4294901760
        %640 = vmatpush1.msra.mxu0 %v639
        %641 = vmatprep.subr.mxu0 0.0
        %v642 = vand.u32 %v205, 4294901760
        %643 = vmatpush1.msra.mxu0 %v642
        %644 = vmatprep.subr.mxu0 0.0
        %v645 = vand.u32 %v206, 4294901760
        %646 = vmatpush1.msra.mxu0 %v645
        %647 = vmatprep.subr.mxu0 0.0
        %648 = vmatpush1.msra.mxu0 0.0
        %649 = vmatprep.subr.mxu0 0.0
        %650 = vmatpush1.msra.mxu0 0.0
        %651 = vmatprep.subr.mxu0 0.0
        %652 = vmatpush1.msra.mxu0 0.0
        %653 = vmatprep.subr.mxu0 0.0
        %654 = vmatpush1.msra.mxu0 0.0
        %655 = vmatprep.subr.mxu0 0.0
        %656 = vmatpush1.msra.mxu0 0.0
        %657 = vmatprep.subr.mxu0 0.0
        %658 = vmatpush1.msra.mxu0 0.0
        %659 = vmatprep.subr.mxu0 0.0
        %660 = vmatpush1.msra.mxu0 0.0
        %661 = vmatprep.subr.mxu0 0.0
        %662 = vmatpush1.msra.mxu0 0.0
        %663 = vmatprep.subr.mxu0 0.0
        %664 = vmatpush1.msra.mxu0 0.0
        %665 = vmatprep.subr.mxu0 0.0
        %666 = vmatpush1.msra.mxu0 0.0
        %667 = vmatprep.subr.mxu0 0.0
        %668 = vmatpush1.msra.mxu0 0.0
        %669 = vmatprep.subr.mxu0 0.0
        %670 = vmatpush1.msra.mxu0 0.0
        %671 = vmatprep.subr.mxu0 0.0
        %672 = vmatpush1.msra.mxu0 0.0
        %673 = vmatprep.subr.mxu0 0.0
        %674 = vmatpush1.msra.mxu0 0.0
        %675 = vmatprep.subr.mxu0 0.0
        %676 = vmatpush1.msra.mxu0 0.0
        %677 = vmatprep.subr.mxu0 0.0
        %678 = vmatpush1.msra.mxu0 0.0
        %679 = vmatprep.mubr.f32.mxu0 0.0
        %v680 = vand.u32 %v188, 4294901760
        %v681 = vsub.f32 %v188, %v680
        %v682 = vand.u32 %v681, 4294901760
        %683 = vmatmul.mubr.f32.gmra.mrb[0].mxu0 %v682
        %v684 = vpop.f32.mrb[0].mxu0
        %v685 = vadd.f32 %v582, %v684
        %v686 = vpop.f32.mrb[0].mxu0
        %687 = vmatprep.mubr.f32.mxu0 0.0
        %v688 = vand.u32 %v189, 4294901760
        %v689 = vsub.f32 %v189, %v688
        %v690 = vand.u32 %v689, 4294901760
        %691 = vmatmul.mubr.f32.gmra.mrb[0].mxu0 %v690
        %v692 = vpop.f32.mrb[0].mxu0
        %v693 = vadd.f32 %v589, %v692
        %v694 = vpop.f32.mrb[0].mxu0
        %695 = vmatprep.mubr.f32.mxu0 0.0
        %v696 = vand.u32 %v190, 4294901760
        %v697 = vsub.f32 %v190, %v696
        %v698 = vand.u32 %v697, 4294901760
        %699 = vmatmul.mubr.f32.gmra.mrb[0].mxu0 %v698
        %v700 = vpop.f32.mrb[0].mxu0
        %v701 = vadd.f32 %v596, %v700
        %v702 = vpop.f32.mrb[0].mxu0
        %703 = vdwg.mxu0
        %704 = vmatprep.subr.mxu0 0.0
        %v705 = vand.u32 %v191, 4294901760
        %v706 = vsub.f32 %v191, %v705
        %v707 = vand.u32 %v706, 4294901760
        %708 = vmatpush1.msra.mxu0 %v707
        %709 = vmatprep.subr.mxu0 0.0
        %v710 = vand.u32 %v192, 4294901760
        %v711 = vsub.f32 %v192, %v710
        %v712 = vand.u32 %v711, 4294901760
        %713 = vmatpush1.msra.mxu0 %v712
        %714 = vmatprep.subr.mxu0 0.0
        %v715 = vand.u32 %v193, 4294901760
        %v716 = vsub.f32 %v193, %v715
        %v717 = vand.u32 %v716, 4294901760
        %718 = vmatpush1.msra.mxu0 %v717
        %719 = vmatprep.subr.mxu0 0.0
        %v720 = vand.u32 %v194, 4294901760
        %v721 = vsub.f32 %v194, %v720
        %v722 = vand.u32 %v721, 4294901760
        %723 = vmatpush1.msra.mxu0 %v722
        %724 = vmatprep.subr.mxu0 0.0
        %v725 = vand.u32 %v195, 4294901760
        %v726 = vsub.f32 %v195, %v725
        %v727 = vand.u32 %v726, 4294901760
        %728 = vmatpush1.msra.mxu0 %v727
        %729 = vmatprep.subr.mxu0 0.0
        %v730 = vand.u32 %v196, 4294901760
        %v731 = vsub.f32 %v196, %v730
        %v732 = vand.u32 %v731, 4294901760
        %733 = vmatpush1.msra.mxu0 %v732
        %734 = vmatprep.subr.mxu0 0.0
        %v735 = vand.u32 %v197, 4294901760
        %v736 = vsub.f32 %v197, %v735
        %v737 = vand.u32 %v736, 4294901760
        %738 = vmatpush1.msra.mxu0 %v737
        %739 = vmatprep.subr.mxu0 0.0
        %v740 = vand.u32 %v198, 4294901760
        %v741 = vsub.f32 %v198, %v740
        %v742 = vand.u32 %v741, 4294901760
        %743 = vmatpush1.msra.mxu0 %v742
        %744 = vmatprep.subr.mxu0 0.0
        %v745 = vand.u32 %v199, 4294901760
        %v746 = vsub.f32 %v199, %v745
        %v747 = vand.u32 %v746, 4294901760
        %748 = vmatpush1.msra.mxu0 %v747
        %749 = vmatprep.subr.mxu0 0.0
        %v750 = vand.u32 %v200, 4294901760
        %v751 = vsub.f32 %v200, %v750
        %v752 = vand.u32 %v751, 4294901760
        %753 = vmatpush1.msra.mxu0 %v752
        %754 = vmatprep.subr.mxu0 0.0
        %v755 = vand.u32 %v201, 4294901760
        %v756 = vsub.f32 %v201, %v755
        %v757 = vand.u32 %v756, 4294901760
        %758 = vmatpush1.msra.mxu0 %v757
        %759 = vmatprep.subr.mxu0 0.0
        %v760 = vand.u32 %v202, 4294901760
        %v761 = vsub.f32 %v202, %v760
        %v762 = vand.u32 %v761, 4294901760
        %763 = vmatpush1.msra.mxu0 %v762
        %764 = vmatprep.subr.mxu0 0.0
        %v765 = vand.u32 %v203, 4294901760
        %v766 = vsub.f32 %v203, %v765
        %v767 = vand.u32 %v766, 4294901760
        %768 = vmatpush1.msra.mxu0 %v767
        %769 = vmatprep.subr.mxu0 0.0
        %v770 = vand.u32 %v204, 4294901760
        %v771 = vsub.f32 %v204, %v770
        %v772 = vand.u32 %v771, 4294901760
        %773 = vmatpush1.msra.mxu0 %v772
        %774 = vmatprep.subr.mxu0 0.0
        %v775 = vand.u32 %v205, 4294901760
        %v776 = vsub.f32 %v205, %v775
        %v777 = vand.u32 %v776, 4294901760
        %778 = vmatpush1.msra.mxu0 %v777
        %779 = vmatprep.subr.mxu0 0.0
        %v780 = vand.u32 %v206, 4294901760
        %v781 = vsub.f32 %v206, %v780
        %v782 = vand.u32 %v781, 4294901760
        %783 = vmatpush1.msra.mxu0 %v782
        %784 = vmatprep.subr.mxu0 0.0
        %785 = vmatpush1.msra.mxu0 0.0
        %786 = vmatprep.subr.mxu0 0.0
        %787 = vmatpush1.msra.mxu0 0.0
        %788 = vmatprep.subr.mxu0 0.0
        %789 = vmatpush1.msra.mxu0 0.0
        %790 = vmatprep.subr.mxu0 0.0
        %791 = vmatpush1.msra.mxu0 0.0
        %792 = vmatprep.subr.mxu0 0.0
        %793 = vmatpush1.msra.mxu0 0.0
        %794 = vmatprep.subr.mxu0 0.0
        %795 = vmatpush1.msra.mxu0 0.0
        %796 = vmatprep.subr.mxu0 0.0
        %797 = vmatpush1.msra.mxu0 0.0
        %798 = vmatprep.subr.mxu0 0.0
        %799 = vmatpush1.msra.mxu0 0.0
        %800 = vmatprep.subr.mxu0 0.0
        %801 = vmatpush1.msra.mxu0 0.0
        %802 = vmatprep.subr.mxu0 0.0
        %803 = vmatpush1.msra.mxu0 0.0
        %804 = vmatprep.subr.mxu0 0.0
        %805 = vmatpush1.msra.mxu0 0.0
        %806 = vmatprep.subr.mxu0 0.0
        %807 = vmatpush1.msra.mxu0 0.0
        %808 = vmatprep.subr.mxu0 0.0
        %809 = vmatpush1.msra.mxu0 0.0
        %810 = vmatprep.subr.mxu0 0.0
        %811 = vmatpush1.msra.mxu0 0.0
        %812 = vmatprep.subr.mxu0 0.0
        %813 = vmatpush1.msra.mxu0 0.0
        %814 = vmatprep.subr.mxu0 0.0
        %815 = vmatpush1.msra.mxu0 0.0
        %816 = vmatprep.mubr.f32.mxu0 0.0
        %v817 = vand.u32 %v188, 4294901760
        %818 = vmatmul.mubr.f32.gmra.mrb[0].mxu0 %v817
        %v819 = vpop.f32.mrb[0].mxu0
        %v820 = vadd.f32 %v685, %v819
        %v821 = vpop.f32.mrb[0].mxu0
        %822 = vmatprep.mubr.f32.mxu0 0.0
        %v823 = vand.u32 %v189, 4294901760
        %824 = vmatmul.mubr.f32.gmra.mrb[0].mxu0 %v823
        %v825 = vpop.f32.mrb[0].mxu0
        %v826 = vadd.f32 %v693, %v825
        %v827 = vpop.f32.mrb[0].mxu0
        %828 = vmatprep.mubr.f32.mxu0 0.0
        %v829 = vand.u32 %v190, 4294901760
        %830 = vmatmul.mubr.f32.gmra.mrb[0].mxu0 %v829
        %v831 = vpop.f32.mrb[0].mxu0
        %v832 = vadd.f32 %v701, %v831
        %v833 = vpop.f32.mrb[0].mxu0
        %834 = vdwg.mxu0
        %835 = vmatprep.subr.mxu0 0.0
        %v836 = vand.u32 %v191, 4294901760
        %837 = vmatpush1.msra.mxu0 %v836
        %838 = vmatprep.subr.mxu0 0.0
        %v839 = vand.u32 %v192, 4294901760
        %840 = vmatpush1.msra.mxu0 %v839
        %841 = vmatprep.subr.mxu0 0.0
        %v842 = vand.u32 %v193, 4294901760
        %843 = vmatpush1.msra.mxu0 %v842
        %844 = vmatprep.subr.mxu0 0.0
        %v845 = vand.u32 %v194, 4294901760
        %846 = vmatpush1.msra.mxu0 %v845
        %847 = vmatprep.subr.mxu0 0.0
        %v848 = vand.u32 %v195, 4294901760
        %849 = vmatpush1.msra.mxu0 %v848
        %850 = vmatprep.subr.mxu0 0.0
        %v851 = vand.u32 %v196, 4294901760
        %852 = vmatpush1.msra.mxu0 %v851
        %853 = vmatprep.subr.mxu0 0.0
        %v854 = vand.u32 %v197, 4294901760
        %855 = vmatpush1.msra.mxu0 %v854
        %856 = vmatprep.subr.mxu0 0.0
        %v857 = vand.u32 %v198, 4294901760
        %858 = vmatpush1.msra.mxu0 %v857
        %859 = vmatprep.subr.mxu0 0.0
        %v860 = vand.u32 %v199, 4294901760
        %861 = vmatpush1.msra.mxu0 %v860
        %862 = vmatprep.subr.mxu0 0.0
        %v863 = vand.u32 %v200, 4294901760
        %864 = vmatpush1.msra.mxu0 %v863
        %865 = vmatprep.subr.mxu0 0.0
        %v866 = vand.u32 %v201, 4294901760
        %867 = vmatpush1.msra.mxu0 %v866
        %868 = vmatprep.subr.mxu0 0.0
        %v869 = vand.u32 %v202, 4294901760
        %870 = vmatpush1.msra.mxu0 %v869
        %871 = vmatprep.subr.mxu0 0.0
        %v872 = vand.u32 %v203, 4294901760
        %873 = vmatpush1.msra.mxu0 %v872
        %874 = vmatprep.subr.mxu0 0.0
        %v875 = vand.u32 %v204, 4294901760
        %876 = vmatpush1.msra.mxu0 %v875
        %877 = vmatprep.subr.mxu0 0.0
        %v878 = vand.u32 %v205, 4294901760
        %879 = vmatpush1.msra.mxu0 %v878
        %880 = vmatprep.subr.mxu0 0.0
        %v881 = vand.u32 %v206, 4294901760
        %882 = vmatpush1.msra.mxu0 %v881
        %883 = vmatprep.subr.mxu0 0.0
        %884 = vmatpush1.msra.mxu0 0.0
        %885 = vmatprep.subr.mxu0 0.0
        %886 = vmatpush1.msra.mxu0 0.0
        %887 = vmatprep.subr.mxu0 0.0
        %888 = vmatpush1.msra.mxu0 0.0
        %889 = vmatprep.subr.mxu0 0.0
        %890 = vmatpush1.msra.mxu0 0.0
        %891 = vmatprep.subr.mxu0 0.0
        %892 = vmatpush1.msra.mxu0 0.0
        %893 = vmatprep.subr.mxu0 0.0
        %894 = vmatpush1.msra.mxu0 0.0
        %895 = vmatprep.subr.mxu0 0.0
        %896 = vmatpush1.msra.mxu0 0.0
        %897 = vmatprep.subr.mxu0 0.0
        %898 = vmatpush1.msra.mxu0 0.0
        %899 = vmatprep.subr.mxu0 0.0
        %900 = vmatpush1.msra.mxu0 0.0
        %901 = vmatprep.subr.mxu0 0.0
        %902 = vmatpush1.msra.mxu0 0.0
        %903 = vmatprep.subr.mxu0 0.0
        %904 = vmatpush1.msra.mxu0 0.0
        %905 = vmatprep.subr.mxu0 0.0
        %906 = vmatpush1.msra.mxu0 0.0
        %907 = vmatprep.subr.mxu0 0.0
        %908 = vmatpush1.msra.mxu0 0.0
        %909 = vmatprep.subr.mxu0 0.0
        %910 = vmatpush1.msra.mxu0 0.0
        %911 = vmatprep.subr.mxu0 0.0
        %912 = vmatpush1.msra.mxu0 0.0
        %913 = vmatprep.subr.mxu0 0.0
        %914 = vmatpush1.msra.mxu0 0.0
        %915 = vmatprep.mubr.f32.mxu0 0.0
        %v916 = vand.u32 %v188, 4294901760
        %917 = vmatmul.mubr.f32.gmra.mrb[0].mxu0 %v916
        %v918 = vpop.f32.mrb[0].mxu0
        %v919 = vadd.f32 %v820, %v918
        %v920 = vpop.f32.mrb[0].mxu0
        %921 = vmatprep.mubr.f32.mxu0 0.0
        %v922 = vand.u32 %v189, 4294901760
        %923 = vmatmul.mubr.f32.gmra.mrb[0].mxu0 %v922
        %v924 = vpop.f32.mrb[0].mxu0
        %v925 = vadd.f32 %v826, %v924
        %v926 = vpop.f32.mrb[0].mxu0
        %927 = vmatprep.mubr.f32.mxu0 0.0
        %v928 = vand.u32 %v190, 4294901760
        %929 = vmatmul.mubr.f32.gmra.mrb[0].mxu0 %v928
        %v930 = vpop.f32.mrb[0].mxu0
        %v931 = vadd.f32 %v832, %v930
        %v932 = vpop.f32.mrb[0].mxu0
        %933 = vdwg.mxu0
        %vm934 = vcmask 261120
        %935 = vst.msk [vmem:[%s145] sm:$0xff] %vm934, %v919
        %936 = vst.msk [vmem:[%s145 + $0x8] sm:$0xff] %vm934, %v925
        %937 = vst.msk [vmem:[%s145 + $0x10] sm:$0xff] %vm934, %v931
        %s938 = sand.u32 %s68, 1
        %s939 = sand.u32 %s68, 1
        %s940 = smul.addr %s939, 24
        %s941 = scalar_lea.vmem [#allocation2], %s940
        // Predicated region
        $region29: #{tpu_custom_call.1} parent=27 // pred_check
          %p942 = pneg %p78
        $region30: #{tpu_custom_call.1} parent=27 // pred_check_branch
          %944 = sbr.rel (%p942) target = $region32
        $region31: #{tpu_custom_call.1} parent=27 // pred_region
          %s945 = smul.u32 3, %s13
          %s946 = ssub.s32 5, %s945
          %p947 = scmp.lt.s32.totalorder %s946, 3
          %s948 = scalar_select %p947, %s946, 3
          %s949 = smul.u32 128, %s948
          %p950 = scmp.ne.s32.totalorder 0, %s949
          %s951 = smul.addr %s945, 8
          %s952 = scalar_lea.vmem %s2, %s951
          // Predicated region
          $region33: #{tpu_custom_call.1} parent=31 // pred_check
            %p953 = pneg %p950
          $region34: #{tpu_custom_call.1} parent=31 // pred_check_branch
            %955 = sbr.rel (%p953) target = $region36
          $region35: #{tpu_custom_call.1} parent=31 // pred_region
            // Predicated region
            $region37: #{tpu_custom_call.1} parent=35 // pred_check
              _
            $region38: #{tpu_custom_call.1} parent=35 // pred_check_branch
              %957 = sbr.rel (0) target = $region40
            $region39: #{tpu_custom_call.1} parent=35 // pred_region
              // Predicated region
              $region59: #{tpu_custom_call.1} parent=39 // pred_check
                _
              $region60: #{tpu_custom_call.1} parent=39 // pred_check_branch
                %1011 = sbr.rel (0) target = $region62
              $region61: #{tpu_custom_call.1} parent=39 // pred_region
                %s1012 = sdiv.u32.pop %s948, 3
                %s1013 = srem.u32.pop %s948, 3
                // While loop
                $region63: #{tpu_custom_call.1} parent=61 // loop_pre_header
                  _
                $region64: #{tpu_custom_call.1} parent=61 // loop_header
                  %s1015 = sphi 0, %s1017
                  %p1016 = scmp.ge.s32.totalorder %s1015, %s1012
                  %s1020 = sphi 0, %s1031
                  %s1021 = sphi %s941, %s1034
                  %s1022 = sphi %s952, %s1035
                $region65: #{tpu_custom_call.1} parent=61 // loop_header_branch
                  %1019 = sbr.rel (%p1016) target = $region69
                $region66: #{tpu_custom_call.1} parent=61 // loop_body
                  %v1023 = vld [vmem:[%s1021] sm:$0xff]
                  %1024 = vst [vmem:[%s1022] sm:$0xff] %v1023
                  %v1025 = vld [vmem:[%s1021 + $0x8] sm:$0xff]
                  %1026 = vst [vmem:[%s1022 + $0x8] sm:$0xff] %v1025
                  %v1027 = vld [vmem:[%s1021 + $0x10] sm:$0xff]
                  %1028 = vst [vmem:[%s1022 + $0x10] sm:$0xff] %v1027
                  %s1029 = sadd.s32 1, %s1020
                  %p1030 = scmp.ge.s32.totalorder %s1029, %s1012
                  %s1031 = scalar_select %p1030, 0, %s1029
                  %s1032 = smul.u32 %s1031, 24
                  %s1033 = smul.u32 %s1031, 24
                  %s1034 = scalar_lea.vmem %s941, %s1032 [#allocation2]
                  %s1035 = scalar_lea.vmem %s952, %s1033
                $region67: #{tpu_custom_call.1} parent=61 // loop_footer
                  %s1017 = sadd.s32 %s1015, 1
                $region68: #{tpu_custom_call.1} parent=61 // loop_footer_branch
                  %1014 = sbr.rel target = $region64
                $region69: #{tpu_custom_call.1} parent=61 // loop_exit
                  _
                %s1036 = sdiv.u32.pop %s948, 3
                %s1037 = srem.u32.pop %s948, 3
                %s1038 = smul.u32 %s1036, 3
                %s1039 = smul.u32 8, %s1038
                %s1040 = scalar_lea.vmem %s941, %s1039 [#allocation2]
                %s1041 = smul.u32 8, %s1038
                %s1042 = scalar_lea.vmem %s952, %s1041
                // While loop
                $region70: #{tpu_custom_call.1} parent=61 // loop_pre_header
                  _
                $region71: #{tpu_custom_call.1} parent=61 // loop_header
                  %s1044 = sphi 0, %s1046
                  %p1045 = scmp.ge.s32.totalorder %s1044, %s1037
                  %s1049 = sphi 0, %s1056
                  %s1050 = sphi %s1040, %s1059
                  %s1051 = sphi %s1042, %s1060
                $region72: #{tpu_custom_call.1} parent=61 // loop_header_branch
                  %1048 = sbr.rel (%p1045) target = $region76
                $region73: #{tpu_custom_call.1} parent=61 // loop_body
                  %v1052 = vld [vmem:[%s1050] sm:$0xff]
                  %1053 = vst [vmem:[%s1051] sm:$0xff] %v1052
                  %s1054 = sadd.s32 1, %s1049
                  %p1055 = scmp.ge.s32.totalorder %s1054, %s1037
                  %s1056 = scalar_select %p1055, 0, %s1054
                  %s1057 = smul.u32 %s1056, 8
                  %s1058 = smul.u32 %s1056, 8
                  %s1059 = scalar_lea.vmem %s1040, %s1057 [#allocation2]
                  %s1060 = scalar_lea.vmem %s1042, %s1058
                $region74: #{tpu_custom_call.1} parent=61 // loop_footer
                  %s1046 = sadd.s32 %s1044, 1
                $region75: #{tpu_custom_call.1} parent=61 // loop_footer_branch
                  %1043 = sbr.rel target = $region71
                $region76: #{tpu_custom_call.1} parent=61 // loop_exit
                  _
              $region62: #{tpu_custom_call.1} parent=39 // pred_fallthru
                _
              // Predicated region
              $region77: #{tpu_custom_call.1} parent=39 // pred_check
                _
              $region78: #{tpu_custom_call.1} parent=39 // pred_check_branch
                %1062 = sbr.rel target = $region80
              $region79: #{tpu_custom_call.1} parent=39 // pred_region
                _
              $region80: #{tpu_custom_call.1} parent=39 // pred_fallthru
                _
            $region40: #{tpu_custom_call.1} parent=35 // pred_fallthru
              _
            // Predicated region
            $region41: #{tpu_custom_call.1} parent=35 // pred_check
              _
            $region42: #{tpu_custom_call.1} parent=35 // pred_check_branch
              %959 = sbr.rel target = $region44
            $region43: #{tpu_custom_call.1} parent=35 // pred_region
              %s961 = sdiv.u32.pop %s948, 3
              %s962 = srem.u32.pop %s948, 3
              // While loop
              $region45: #{tpu_custom_call.1} parent=43 // loop_pre_header
                _
              $region46: #{tpu_custom_call.1} parent=43 // loop_header
                %s964 = sphi 0, %s966
                %p965 = scmp.ge.s32.totalorder %s964, %s961
                %s969 = sphi 0, %s980
                %s970 = sphi %s941, %s983
                %s971 = sphi %s952, %s984
              $region47: #{tpu_custom_call.1} parent=43 // loop_header_branch
                %968 = sbr.rel (%p965) target = $region51
              $region48: #{tpu_custom_call.1} parent=43 // loop_body
                %v972 = vld [vmem:[%s970] sm:$0xff]
                %973 = vst [vmem:[%s971] sm:$0xff] %v972
                %v974 = vld [vmem:[%s970 + $0x8] sm:$0xff]
                %975 = vst [vmem:[%s971 + $0x8] sm:$0xff] %v974
                %v976 = vld [vmem:[%s970 + $0x10] sm:$0xff]
                %977 = vst [vmem:[%s971 + $0x10] sm:$0xff] %v976
                %s978 = sadd.s32 1, %s969
                %p979 = scmp.ge.s32.totalorder %s978, %s961
                %s980 = scalar_select %p979, 0, %s978
                %s981 = smul.u32 %s980, 24
                %s982 = smul.u32 %s980, 24
                %s983 = scalar_lea.vmem %s941, %s981 [#allocation2]
                %s984 = scalar_lea.vmem %s952, %s982
              $region49: #{tpu_custom_call.1} parent=43 // loop_footer
                %s966 = sadd.s32 %s964, 1
              $region50: #{tpu_custom_call.1} parent=43 // loop_footer_branch
                %963 = sbr.rel target = $region46
              $region51: #{tpu_custom_call.1} parent=43 // loop_exit
                _
              %s985 = sdiv.u32.pop %s948, 3
              %s986 = srem.u32.pop %s948, 3
              %s987 = smul.u32 %s985, 3
              %s988 = smul.u32 8, %s987
              %s989 = scalar_lea.vmem %s941, %s988 [#allocation2]
              %s990 = smul.u32 8, %s987
              %s991 = scalar_lea.vmem %s952, %s990
              // While loop
              $region52: #{tpu_custom_call.1} parent=43 // loop_pre_header
                _
              $region53: #{tpu_custom_call.1} parent=43 // loop_header
                %s993 = sphi 0, %s995
                %p994 = scmp.ge.s32.totalorder %s993, %s986
                %s998 = sphi 0, %s1005
                %s999 = sphi %s989, %s1008
                %s1000 = sphi %s991, %s1009
              $region54: #{tpu_custom_call.1} parent=43 // loop_header_branch
                %997 = sbr.rel (%p994) target = $region58
              $region55: #{tpu_custom_call.1} parent=43 // loop_body
                %v1001 = vld [vmem:[%s999] sm:$0xff]
                %1002 = vst [vmem:[%s1000] sm:$0xff] %v1001
                %s1003 = sadd.s32 1, %s998
                %p1004 = scmp.ge.s32.totalorder %s1003, %s986
                %s1005 = scalar_select %p1004, 0, %s1003
                %s1006 = smul.u32 %s1005, 8
                %s1007 = smul.u32 %s1005, 8
                %s1008 = scalar_lea.vmem %s989, %s1006 [#allocation2]
                %s1009 = scalar_lea.vmem %s991, %s1007
              $region56: #{tpu_custom_call.1} parent=43 // loop_footer
                %s995 = sadd.s32 %s993, 1
              $region57: #{tpu_custom_call.1} parent=43 // loop_footer_branch
                %992 = sbr.rel target = $region53
              $region58: #{tpu_custom_call.1} parent=43 // loop_exit
                _
            $region44: #{tpu_custom_call.1} parent=35 // pred_fallthru
              _
          $region36: #{tpu_custom_call.1} parent=31 // pred_fallthru
            _
          %1063 = vnop
        $region32: #{tpu_custom_call.1} parent=27 // pred_fallthru
          _
      $region28: #{tpu_custom_call.1} parent=5 // pred_fallthru
        _
      %p1064 = scmp.le.s32.totalorder 2, %s8
      // Predicated region
      $region81: #{tpu_custom_call.1} parent=5 // pred_check
        %p1065 = pneg %p1064
      $region82: #{tpu_custom_call.1} parent=5 // pred_check_branch
        %1067 = sbr.rel (%p1065) target = $region84
      $region83: #{tpu_custom_call.1} parent=5 // pred_region
        %s1068 = ssub.s32 %s8, 2
        // Predicated region
        $region85: #{tpu_custom_call.1} parent=83 // pred_check
          %p1069 = pneg %p84
        $region86: #{tpu_custom_call.1} parent=83 // pred_check_branch
          %1071 = sbr.rel (%p1069) target = $region88
        $region87: #{tpu_custom_call.1} parent=83 // pred_region
          %s1072 = sand.u32 %s69, 1
          %s1073 = sand.u32 %s69, 1
          %s1074 = smul.addr %s1073, 24
          %s1075 = scalar_lea.vmem [#allocation2], %s1074
        $region88: #{tpu_custom_call.1} parent=83 // pred_fallthru
          _
      $region84: #{tpu_custom_call.1} parent=5 // pred_fallthru
        _
    $region6: #{tpu_custom_call.1} parent=1 // loop_footer
      %s12 = sadd.s32 1, %s8
    $region7: #{tpu_custom_call.1} parent=1 // loop_footer_branch
      %7 = sbr.rel target = $region3
    $region8: #{tpu_custom_call.1} parent=1 // loop_exit
      _

// kernel: tpu_custom_call.1
$region0: #{tpu_custom_call.1}
  #allocation0 [shape = 'u32[]', space=smem, size = 0x4, offset = 0x4, fixed_abs, tag = 'smem constant byte address 0x4 - core index']
  #allocation1 [shape = 'u32[144,128]{1,0:T(1,128)}', space=vmem, size = 0x12000, scoped, tag = 'internal scratch']
  %s0 = inlined_call_operand.vmem [shape: s32[37,1], index: 0, kind: input, shape index: {}]
  %s1 = inlined_call_operand.vmem [shape: f32[128,32], index: 1, kind: input, shape index: {}]
  %s2 = inlined_call_operand.vmem [shape: f32[37,32], index: 2, kind: output, shape index: {}]
  %s3 = sld [smem:[#allocation0]]
  $region89: #{tpu_custom_call.1} parent=0
    _
  %s5 = ssub.s32 1, %s3
  %s6 = scalar_select 0, %s5, %s3
  $region1: #{tpu_custom_call.1} parent=0
    #allocation2 [shape = 'u8[24576]{0}', space=vmem, size = 0x6000, scoped, tag = 'output window, operand 0']
    loop: start=0, step=1, limit=4
    $region2: #{tpu_custom_call.1} parent=1 // loop_pre_header
      _
    $region3: #{tpu_custom_call.1} parent=1 // loop_header
      %s8 = sphi 0, %s12
      %p9 = scmp.ge.s32.totalorder %s8, 4
      %s18 = sphi 0, %s20
      %s21 = sphi 0, %s18
      %s22 = sphi 0, %s21
      %s38 = sphi 0, %s22
      %s42 = sphi 0, %s42
      %s44 = sphi 0, %s42
      %s45 = sphi 0, %s44
      %s59 = sphi 0, %s45
      %s65 = sphi 0, %s67
      %s68 = sphi 0, %s65
      %s69 = sphi 0, %s68
      %s85 = sphi 0, %s69
    $region4: #{tpu_custom_call.1} parent=1 // loop_header_branch
      %11 = sbr.rel (%p9) target = $region8
    $region5: #{tpu_custom_call.1} parent=1 // loop_body
      %s13 = ssub.s32 %s8, 1
      %s14 = ssub.s32 %s8, 2
      %s15 = sadd.s32 %s8, 1
      %s16 = ssub.s32 %s8, %s15
      %p17 = scmp.eq.s32.totalorder %s16, 0
      %s19 = sadd.s32 %s18, 1
      %s20 = scalar_select %p17, %s18, %s19
      %p23 = pneg %p17
      %p24 = scmp.eq.s32.totalorder %s8, 1
      %p25 = por %p23, %p24
      %p26 = scmp.ne.s32.totalorder %s18, %s21
      %p27 = scmp.eq.s32.totalorder %s8, 0
      %p28 = por %p26, %p27
      %p29 = scmp.ne.s32.totalorder %s18, %s21
      %p30 = scmp.eq.s32.totalorder %s13, 1
      %p31 = por %p29, %p30
      %p32 = scmp.ne.s32.totalorder %s21, %s22
      %p33 = scmp.eq.s32.totalorder %s13, 0
      %p34 = por %p32, %p33
      %p35 = scmp.ne.s32.totalorder %s21, %s22
      %p36 = scmp.eq.s32.totalorder %s14, 1
      %p37 = por %p35, %p36
      %p39 = scmp.ne.s32.totalorder %s22, %s38
      %p40 = scmp.eq.s32.totalorder %s14, 0
      %p41 = por %p39, %p40
      %s43 = sadd.s32 %s42, 1
      %p46 = scmp.eq.s32.totalorder %s8, 1
      %p47 = scmp.ne.s32.totalorder %s42, %s44
      %p48 = scmp.eq.s32.totalorder %s8, 0
      %p49 = por %p47, %p48
      %p50 = scmp.ne.s32.totalorder %s42, %s44
      %p51 = scmp.eq.s32.totalorder %s13, 1
      %p52 = por %p50, %p51
      %p53 = scmp.ne.s32.totalorder %s44, %s45
      %p54 = scmp.eq.s32.totalorder %s13, 0
      %p55 = por %p53, %p54
      %p56 = scmp.ne.s32.totalorder %s44, %s45
      %p57 = scmp.eq.s32.totalorder %s14, 1
      %p58 = por %p56, %p57
      %p60 = scmp.ne.s32.totalorder %s45, %s59
      %p61 = scmp.eq.s32.totalorder %s14, 0
      %p62 = por %p60, %p61
      %s63 = ssub.s32 %s8, %s15
      %p64 = scmp.eq.s32.totalorder %s63, 0
      %s66 = sadd.s32 %s65, 1
      %s67 = scalar_select %p64, %s65, %s66
      %p70 = pneg %p64
      %p71 = scmp.eq.s32.totalorder %s8, 1
      %p72 = por %p70, %p71
      %p73 = scmp.ne.s32.totalorder %s65, %s68
      %p74 = scmp.eq.s32.totalorder %s8, 0
      %p75 = por %p73, %p74
      %p76 = scmp.ne.s32.totalorder %s65, %s68
      %p77 = scmp.eq.s32.totalorder %s13, 1
      %p78 = por %p76, %p77
      %p79 = scmp.ne.s32.totalorder %s68, %s69
      %p80 = scmp.eq.s32.totalorder %s13, 0
      %p81 = por %p79, %p80
      %p82 = scmp.ne.s32.totalorder %s68, %s69
      %p83 = scmp.eq.s32.totalorder %s14, 1
      %p84 = por %p82, %p83
      %p86 = scmp.ne.s32.totalorder %s69, %s85
      %p87 = scmp.eq.s32.totalorder %s14, 0
      %p88 = por %p86, %p87
      %p89 = scmp.le.s32.totalorder 1, %s8
      %p90 = scmp.lt.s32.totalorder %s8, 3
      %p91 = pnand %p89, %p90
      %p92 = pneg %p91
      // Predicated region
      $region9: #{tpu_custom_call.1} parent=5 // pred_check
        _
      $region10: #{tpu_custom_call.1} parent=5 // pred_check_branch
        %94 = sbr.rel (%p91) target = $region12
      $region11: #{tpu_custom_call.1} parent=5 // pred_region
        %s95 = ssub.s32 %s8, 1
        // Predicated region
        $region13: #{tpu_custom_call.1} parent=11 // pred_check
          %p96 = pneg %p55
        $region14: #{tpu_custom_call.1} parent=11 // pred_check_branch
          %98 = sbr.rel (%p96) target = $region16
        $region15: #{tpu_custom_call.1} parent=11 // pred_region
          _
        $region16: #{tpu_custom_call.1} parent=11 // pred_fallthru
          _
      $region12: #{tpu_custom_call.1} parent=5 // pred_fallthru
        _
      %p99 = scmp.lt.s32.totalorder %s8, 2
      // Predicated region
      $region17: #{tpu_custom_call.1} parent=5 // pred_check
        %p100 = pneg %p99
      $region18: #{tpu_custom_call.1} parent=5 // pred_check_branch
        %102 = sbr.rel (%p100) target = $region20
      $region19: #{tpu_custom_call.1} parent=5 // pred_region
        // Predicated region
        $region21: #{tpu_custom_call.1} parent=19 // pred_check
          %p103 = pneg %p28
        $region22: #{tpu_custom_call.1} parent=19 // pred_check_branch
          %105 = sbr.rel (%p103) target = $region24
        $region23: #{tpu_custom_call.1} parent=19 // pred_region
          %s106 = smul.u32 3, %s8
          %s107 = ssub.s32 5, %s106
          %p108 = scmp.lt.s32.totalorder %s107, 3
          %s109 = scalar_select %p108, %s107, 3
          %s110 = smul.u32 128, %s109
          %p111 = scmp.lt.s32.totalorder %s106, 4
          %s112 = scalar_select %p111, %s106, 4
          %s113 = smul.addr %s112, 8
          %s114 = scalar_lea.vmem %s0, %s113
          %s115 = smul.u32 3, %s8
          %s116 = ssub.s32 5, %s115
          %p117 = scmp.lt.s32.totalorder %s116, 3
          %s118 = scalar_select %p117, %s116, 3
          %s119 = smul.u32 128, %s118
        $region24: #{tpu_custom_call.1} parent=19 // pred_fallthru
          _
      $region20: #{tpu_custom_call.1} parent=5 // pred_fallthru
        _
      %p120 = scmp.le.s32.totalorder 1, %s8
      %p121 = scmp.lt.s32.totalorder %s8, 3
      %p122 = pnand %p120, %p121
      %p123 = pneg %p122
      // Predicated region
      $region25: #{tpu_custom_call.1} parent=5 // pred_check
        _
      $region26: #{tpu_custom_call.1} parent=5 // pred_check_branch
        %125 = sbr.rel (%p122) target = $region28
      $region27: #{tpu_custom_call.1} parent=5 // pred_region
        %s126 = ssub.s32 %s8, 1
        %s127 = smul.u32 3, %s13
        %s128 = ssub.s32 5, %s127
        %p129 = scmp.lt.s32.totalorder %s128, 3
        %s130 = scalar_select %p129, %s128, 3
        %s131 = smul.u32 128, %s130
        %p132 = scmp.lt.s32.totalorder %s127, 4
        %s133 = scalar_select %p132, %s127, 4
        %s134 = smul.addr %s133, 8
        %s135 = scalar_lea.vmem %s0, %s134
        %p136 = pneg %p34
        %p137 = pneg %p31
        %p138 = pneg %p55
        %p139 = pneg %p52
        %p140 = pneg %p81
        %p141 = pneg %p78
        %s142 = sand.u32 %s68, 1
        %s143 = sand.u32 %s68, 1
        %s144 = smul.addr %s143, 24
        %s145 = scalar_lea.vmem [#allocation2], %s144
        %s146 = smul.u32 3, %s13
        %s147 = ssub.s32 5, %s146
        %p148 = scmp.lt.s32.totalorder %s147, 3
        %s149 = scalar_select %p148, %s147, 3
        %s150 = smul.u32 128, %s149
        %p151 = scmp.lt.s32.totalorder %s146, 4
        %s152 = scalar_select %p151, %s146, 4
        %s153 = smul.addr %s152, 8
        %s154 = scalar_lea.vmem %s0, %s153
        %s155 = smul.u32 3, %s13
        %s156 = ssub.s32 5, %s155
        %p157 = scmp.lt.s32.totalorder %s156, 3
        %s158 = scalar_select %p157, %s156, 3
        %s159 = smul.u32 128, %s158
        %s160 = smul.u32 3, %s13
        %s161 = ssub.s32 5, %s160
        %p162 = scmp.lt.s32.totalorder %s161, 3
        %s163 = scalar_select %p162, %s161, 3
        %s164 = smul.u32 128, %s163
        %v165 = vld [vmem:[%s154] sm:$0xff]
        %v166 = vld [vmem:[%s154 + $0x8] sm:$0xff]
        %v167 = vld [vmem:[%s154 + $0x10] sm:$0xff]
        %v168 = vsub.s32 %v165, 1
        %v169 = vsub.s32 %v166, 1
        %v170 = vsub.s32 %v167, 1
        %v171 = vlaneseq
        %v172 = vand.u32 %v171, 127
        %173 = vset.pattern.permute.xlu0 0
        %174 = vperm.xlu0 %173, %v168
        %v175 = vpop.permute.xlu0 %174
        %176 = vset.pattern.permute.xlu0 0
        %177 = vperm.xlu0 %176, %v169
        %v178 = vpop.permute.xlu0 %177
        %179 = vset.pattern.permute.xlu0 0
        %180 = vperm.xlu0 %179, %v170
        %v181 = vpop.permute.xlu0 %180
        %vm182 = vcmp.eq.s32.totalorder %v172, %v175
        %vm183 = vcmp.eq.s32.totalorder %v172, %v178
        %vm184 = vcmp.eq.s32.totalorder %v172, %v181
        %v185 = vsel %vm182, 1, 0
        %v186 = vsel %vm183, 1, 0
        %v187 = vsel %vm184, 1, 0
        %v188 = vcvt.s32.f32 %v185
        %v189 = vcvt.s32.f32 %v186
        %v190 = vcvt.s32.f32 %v187
        %v191 = vld [vmem:[%s1] sm:$0xff]
        %v192 = vld [vmem:[%s1 + $0x8] sm:$0xff]
        %v193 = vld [vmem:[%s1 + $0x10] sm:$0xff]
        %v194 = vld [vmem:[%s1 + $0x18] sm:$0xff]
        %v195 = vld [vmem:[%s1 + $0x20] sm:$0xff]
        %v196 = vld [vmem:[%s1 + $0x28] sm:$0xff]
        %v197 = vld [vmem:[%s1 + $0x30] sm:$0xff]
        %v198 = vld [vmem:[%s1 + $0x38] sm:$0xff]
        %v199 = vld [vmem:[%s1 + $0x40] sm:$0xff]
        %v200 = vld [vmem:[%s1 + $0x48] sm:$0xff]
        %v201 = vld [vmem:[%s1 + $0x50] sm:$0xff]
        %v202 = vld [vmem:[%s1 + $0x58] sm:$0xff]
        %v203 = vld [vmem:[%s1 + $0x60] sm:$0xff]
        %v204 = vld [vmem:[%s1 + $0x68] sm:$0xff]
        %v205 = vld [vmem:[%s1 + $0x70] sm:$0xff]
        %v206 = vld [vmem:[%s1 + $0x78] sm:$0xff]
        %207 = vmatprep.subr.mxu0 0.0
        %208 = vmatpush1.msra.mxu0 %v191
        %209 = vmatprep.subr.mxu0 0.0
        %210 = vmatpush1.msra.mxu0 %v192
        %211 = vmatprep.subr.mxu0 0.0
        %212 = vmatpush1.msra.mxu0 %v193
        %213 = vmatprep.subr.mxu0 0.0
        %214 = vmatpush1.msra.mxu0 %v194
        %215 = vmatprep.subr.mxu0 0.0
        %216 = vmatpush1.msra.mxu0 %v195
        %217 = vmatprep.subr.mxu0 0.0
        %218 = vmatpush1.msra.mxu0 %v196
        %219 = vmatprep.subr.mxu0 0.0
        %220 = vmatpush1.msra.mxu0 %v197
        %221 = vmatprep.subr.mxu0 0.0
        %222 = vmatpush1.msra.mxu0 %v198
        %223 = vmatprep.subr.mxu0 0.0
        %224 = vmatpush1.msra.mxu0 %v199
        %225 = vmatprep.subr.mxu0 0.0
        %226 = vmatpush1.msra.mxu0 %v200
        %227 = vmatprep.subr.mxu0 0.0
        %228 = vmatpush1.msra.mxu0 %v201
        %229 = vmatprep.subr.mxu0 0.0
        %230 = vmatpush1.msra.mxu0 %v202
        %231 = vmatprep.subr.mxu0 0.0
        %232 = vmatpush1.msra.mxu0 %v203
        %233 = vmatprep.subr.mxu0 0.0
        %234 = vmatpush1.msra.mxu0 %v204
        %235 = vmatprep.subr.mxu0 0.0
        %236 = vmatpush1.msra.mxu0 %v205
        %237 = vmatprep.subr.mxu0 0.0
        %238 = vmatpush1.msra.mxu0 %v206
        %239 = vmatprep.subr.mxu0 0.0
        %240 = vmatpush1.msra.mxu0 0.0
        %241 = vmatprep.subr.mxu0 0.0
        %242 = vmatpush1.msra.mxu0 0.0
        %243 = vmatprep.subr.mxu0 0.0
        %244 = vmatpush1.msra.mxu0 0.0
        %245 = vmatprep.subr.mxu0 0.0
        %246 = vmatpush1.msra.mxu0 0.0
        %247 = vmatprep.subr.mxu0 0.0
        %248 = vmatpush1.msra.mxu0 0.0
        %249 = vmatprep.subr.mxu0 0.0
        %250 = vmatpush1.msra.mxu0 0.0
        %251 = vmatprep.subr.mxu0 0.0
        %252 = vmatpush1.msra.mxu0 0.0
        %253 = vmatprep.subr.mxu0 0.0
        %254 = vmatpush1.msra.mxu0 0.0
        %255 = vmatprep.subr.mxu0 0.0
        %256 = vmatpush1.msra.mxu0 0.0
        %257 = vmatprep.subr.mxu0 0.0
        %258 = vmatpush1.msra.mxu0 0.0
        %259 = vmatprep.subr.mxu0 0.0
        %260 = vmatpush1.msra.mxu0 0.0
        %261 = vmatprep.subr.mxu0 0.0
        %262 = vmatpush1.msra.mxu0 0.0
        %263 = vmatprep.subr.mxu0 0.0
        %264 = vmatpush1.msra.mxu0 0.0
        %265 = vmatprep.subr.mxu0 0.0
        %266 = vmatpush1.msra.mxu0 0.0
        %267 = vmatprep.subr.mxu0 0.0
        %268 = vmatpush1.msra.mxu0 0.0
        %269 = vmatprep.subr.mxu0 0.0
        %270 = vmatpush1.msra.mxu0 0.0
        %271 = vmatprep.mubr.f32.mxu0 0.0
        %272 = vmatmul.mubr.f32.gmra.mrb[0].mxu0 %v188
        %v273 = vpop.f32.mrb[0].mxu0
        %v274 = vadd.f32 0.0, %v273
        %v275 = vpop.f32.mrb[0].mxu0
        %276 = vmatprep.mubr.f32.mxu0 0.0
        %277 = vmatmul.mubr.f32.gmra.mrb[0].mxu0 %v189
        %v278 = vpop.f32.mrb[0].mxu0
        %v279 = vadd.f32 0.0, %v278
        %v280 = vpop.f32.mrb[0].mxu0
        %281 = vmatprep.mubr.f32.mxu0 0.0
        %282 = vmatmul.mubr.f32.gmra.mrb[0].mxu0 %v190
        %v283 = vpop.f32.mrb[0].mxu0
        %v284 = vadd.f32 0.0, %v283
        %v285 = vpop.f32.mrb[0].mxu0
        %286 = vdwg.mxu0
        %vm287 = vcmask 261120
        %288 = vst.msk [vmem:[%s145] sm:$0xff] %vm287, %v274
        %289 = vst.msk [vmem:[%s145 + $0x8] sm:$0xff] %vm287, %v279
        %290 = vst.msk [vmem:[%s145 + $0x10] sm:$0xff] %vm287, %v284
        %s291 = sand.u32 %s68, 1
        %s292 = sand.u32 %s68, 1
        %s293 = smul.addr %s292, 24
        %s294 = scalar_lea.vmem [#allocation2], %s293
        // Predicated region
        $region29: #{tpu_custom_call.1} parent=27 // pred_check
          %p295 = pneg %p78
        $region30: #{tpu_custom_call.1} parent=27 // pred_check_branch
          %297 = sbr.rel (%p295) target = $region32
        $region31: #{tpu_custom_call.1} parent=27 // pred_region
          %s298 = smul.u32 3, %s13
          %s299 = ssub.s32 5, %s298
          %p300 = scmp.lt.s32.totalorder %s299, 3
          %s301 = scalar_select %p300, %s299, 3
          %s302 = smul.u32 128, %s301
          %p303 = scmp.ne.s32.totalorder 0, %s302
          %s304 = smul.addr %s298, 8
          %s305 = scalar_lea.vmem %s2, %s304
          // Predicated region
          $region33: #{tpu_custom_call.1} parent=31 // pred_check
            %p306 = pneg %p303
          $region34: #{tpu_custom_call.1} parent=31 // pred_check_branch
            %308 = sbr.rel (%p306) target = $region36
          $region35: #{tpu_custom_call.1} parent=31 // pred_region
            // Predicated region
            $region37: #{tpu_custom_call.1} parent=35 // pred_check
              _
            $region38: #{tpu_custom_call.1} parent=35 // pred_check_branch
              %310 = sbr.rel (0) target = $region40
            $region39: #{tpu_custom_call.1} parent=35 // pred_region
              // Predicated region
              $region59: #{tpu_custom_call.1} parent=39 // pred_check
                _
              $region60: #{tpu_custom_call.1} parent=39 // pred_check_branch
                %364 = sbr.rel (0) target = $region62
              $region61: #{tpu_custom_call.1} parent=39 // pred_region
                %s365 = sdiv.u32.pop %s301, 3
                %s366 = srem.u32.pop %s301, 3
                // While loop
                $region63: #{tpu_custom_call.1} parent=61 // loop_pre_header
                  _
                $region64: #{tpu_custom_call.1} parent=61 // loop_header
                  %s368 = sphi 0, %s370
                  %p369 = scmp.ge.s32.totalorder %s368, %s365
                  %s373 = sphi 0, %s384
                  %s374 = sphi %s294, %s387
                  %s375 = sphi %s305, %s388
                $region65: #{tpu_custom_call.1} parent=61 // loop_header_branch
                  %372 = sbr.rel (%p369) target = $region69
                $region66: #{tpu_custom_call.1} parent=61 // loop_body
                  %v376 = vld [vmem:[%s374] sm:$0xff]
                  %377 = vst [vmem:[%s375] sm:$0xff] %v376
                  %v378 = vld [vmem:[%s374 + $0x8] sm:$0xff]
                  %379 = vst [vmem:[%s375 + $0x8] sm:$0xff] %v378
                  %v380 = vld [vmem:[%s374 + $0x10] sm:$0xff]
                  %381 = vst [vmem:[%s375 + $0x10] sm:$0xff] %v380
                  %s382 = sadd.s32 1, %s373
                  %p383 = scmp.ge.s32.totalorder %s382, %s365
                  %s384 = scalar_select %p383, 0, %s382
                  %s385 = smul.u32 %s384, 24
                  %s386 = smul.u32 %s384, 24
                  %s387 = scalar_lea.vmem %s294, %s385 [#allocation2]
                  %s388 = scalar_lea.vmem %s305, %s386
                $region67: #{tpu_custom_call.1} parent=61 // loop_footer
                  %s370 = sadd.s32 %s368, 1
                $region68: #{tpu_custom_call.1} parent=61 // loop_footer_branch
                  %367 = sbr.rel target = $region64
                $region69: #{tpu_custom_call.1} parent=61 // loop_exit
                  _
                %s389 = sdiv.u32.pop %s301, 3
                %s390 = srem.u32.pop %s301, 3
                %s391 = smul.u32 %s389, 3
                %s392 = smul.u32 8, %s391
                %s393 = scalar_lea.vmem %s294, %s392 [#allocation2]
                %s394 = smul.u32 8, %s391
                %s395 = scalar_lea.vmem %s305, %s394
                // While loop
                $region70: #{tpu_custom_call.1} parent=61 // loop_pre_header
                  _
                $region71: #{tpu_custom_call.1} parent=61 // loop_header
                  %s397 = sphi 0, %s399
                  %p398 = scmp.ge.s32.totalorder %s397, %s390
                  %s402 = sphi 0, %s409
                  %s403 = sphi %s393, %s412
                  %s404 = sphi %s395, %s413
                $region72: #{tpu_custom_call.1} parent=61 // loop_header_branch
                  %401 = sbr.rel (%p398) target = $region76
                $region73: #{tpu_custom_call.1} parent=61 // loop_body
                  %v405 = vld [vmem:[%s403] sm:$0xff]
                  %406 = vst [vmem:[%s404] sm:$0xff] %v405
                  %s407 = sadd.s32 1, %s402
                  %p408 = scmp.ge.s32.totalorder %s407, %s390
                  %s409 = scalar_select %p408, 0, %s407
                  %s410 = smul.u32 %s409, 8
                  %s411 = smul.u32 %s409, 8
                  %s412 = scalar_lea.vmem %s393, %s410 [#allocation2]
                  %s413 = scalar_lea.vmem %s395, %s411
                $region74: #{tpu_custom_call.1} parent=61 // loop_footer
                  %s399 = sadd.s32 %s397, 1
                $region75: #{tpu_custom_call.1} parent=61 // loop_footer_branch
                  %396 = sbr.rel target = $region71
                $region76: #{tpu_custom_call.1} parent=61 // loop_exit
                  _
              $region62: #{tpu_custom_call.1} parent=39 // pred_fallthru
                _
              // Predicated region
              $region77: #{tpu_custom_call.1} parent=39 // pred_check
                _
              $region78: #{tpu_custom_call.1} parent=39 // pred_check_branch
                %415 = sbr.rel target = $region80
              $region79: #{tpu_custom_call.1} parent=39 // pred_region
                _
              $region80: #{tpu_custom_call.1} parent=39 // pred_fallthru
                _
            $region40: #{tpu_custom_call.1} parent=35 // pred_fallthru
              _
            // Predicated region
            $region41: #{tpu_custom_call.1} parent=35 // pred_check
              _
            $region42: #{tpu_custom_call.1} parent=35 // pred_check_branch
              %312 = sbr.rel target = $region44
            $region43: #{tpu_custom_call.1} parent=35 // pred_region
              %s314 = sdiv.u32.pop %s301, 3
              %s315 = srem.u32.pop %s301, 3
              // While loop
              $region45: #{tpu_custom_call.1} parent=43 // loop_pre_header
                _
              $region46: #{tpu_custom_call.1} parent=43 // loop_header
                %s317 = sphi 0, %s319
                %p318 = scmp.ge.s32.totalorder %s317, %s314
                %s322 = sphi 0, %s333
                %s323 = sphi %s294, %s336
                %s324 = sphi %s305, %s337
              $region47: #{tpu_custom_call.1} parent=43 // loop_header_branch
                %321 = sbr.rel (%p318) target = $region51
              $region48: #{tpu_custom_call.1} parent=43 // loop_body
                %v325 = vld [vmem:[%s323] sm:$0xff]
                %326 = vst [vmem:[%s324] sm:$0xff] %v325
                %v327 = vld [vmem:[%s323 + $0x8] sm:$0xff]
                %328 = vst [vmem:[%s324 + $0x8] sm:$0xff] %v327
                %v329 = vld [vmem:[%s323 + $0x10] sm:$0xff]
                %330 = vst [vmem:[%s324 + $0x10] sm:$0xff] %v329
                %s331 = sadd.s32 1, %s322
                %p332 = scmp.ge.s32.totalorder %s331, %s314
                %s333 = scalar_select %p332, 0, %s331
                %s334 = smul.u32 %s333, 24
                %s335 = smul.u32 %s333, 24
                %s336 = scalar_lea.vmem %s294, %s334 [#allocation2]
                %s337 = scalar_lea.vmem %s305, %s335
              $region49: #{tpu_custom_call.1} parent=43 // loop_footer
                %s319 = sadd.s32 %s317, 1
              $region50: #{tpu_custom_call.1} parent=43 // loop_footer_branch
                %316 = sbr.rel target = $region46
              $region51: #{tpu_custom_call.1} parent=43 // loop_exit
                _
              %s338 = sdiv.u32.pop %s301, 3
              %s339 = srem.u32.pop %s301, 3
              %s340 = smul.u32 %s338, 3
              %s341 = smul.u32 8, %s340
              %s342 = scalar_lea.vmem %s294, %s341 [#allocation2]
              %s343 = smul.u32 8, %s340
              %s344 = scalar_lea.vmem %s305, %s343
              // While loop
              $region52: #{tpu_custom_call.1} parent=43 // loop_pre_header
                _
              $region53: #{tpu_custom_call.1} parent=43 // loop_header
                %s346 = sphi 0, %s348
                %p347 = scmp.ge.s32.totalorder %s346, %s339
                %s351 = sphi 0, %s358
                %s352 = sphi %s342, %s361
                %s353 = sphi %s344, %s362
              $region54: #{tpu_custom_call.1} parent=43 // loop_header_branch
                %350 = sbr.rel (%p347) target = $region58
              $region55: #{tpu_custom_call.1} parent=43 // loop_body
                %v354 = vld [vmem:[%s352] sm:$0xff]
                %355 = vst [vmem:[%s353] sm:$0xff] %v354
                %s356 = sadd.s32 1, %s351
                %p357 = scmp.ge.s32.totalorder %s356, %s339
                %s358 = scalar_select %p357, 0, %s356
                %s359 = smul.u32 %s358, 8
                %s360 = smul.u32 %s358, 8
                %s361 = scalar_lea.vmem %s342, %s359 [#allocation2]
                %s362 = scalar_lea.vmem %s344, %s360
              $region56: #{tpu_custom_call.1} parent=43 // loop_footer
                %s348 = sadd.s32 %s346, 1
              $region57: #{tpu_custom_call.1} parent=43 // loop_footer_branch
                %345 = sbr.rel target = $region53
              $region58: #{tpu_custom_call.1} parent=43 // loop_exit
                _
            $region44: #{tpu_custom_call.1} parent=35 // pred_fallthru
              _
          $region36: #{tpu_custom_call.1} parent=31 // pred_fallthru
            _
          %416 = vnop
        $region32: #{tpu_custom_call.1} parent=27 // pred_fallthru
          _
      $region28: #{tpu_custom_call.1} parent=5 // pred_fallthru
        _
      %p417 = scmp.le.s32.totalorder 2, %s8
      // Predicated region
      $region81: #{tpu_custom_call.1} parent=5 // pred_check
        %p418 = pneg %p417
      $region82: #{tpu_custom_call.1} parent=5 // pred_check_branch
        %420 = sbr.rel (%p418) target = $region84
      $region83: #{tpu_custom_call.1} parent=5 // pred_region
        %s421 = ssub.s32 %s8, 2
        // Predicated region
        $region85: #{tpu_custom_call.1} parent=83 // pred_check
          %p422 = pneg %p84
        $region86: #{tpu_custom_call.1} parent=83 // pred_check_branch
          %424 = sbr.rel (%p422) target = $region88
        $region87: #{tpu_custom_call.1} parent=83 // pred_region
          %s425 = sand.u32 %s69, 1
          %s426 = sand.u32 %s69, 1
          %s427 = smul.addr %s426, 24
          %s428 = scalar_lea.vmem [#allocation2], %s427
        $region88: #{tpu_custom_call.1} parent=83 // pred_fallthru
          _
      $region84: #{tpu_custom_call.1} parent=5 // pred_fallthru
        _
    $region6: #{tpu_custom_call.1} parent=1 // loop_footer
      %s12 = sadd.s32 1, %s8
    $region7: #{tpu_custom_call.1} parent=1 // loop_footer_branch
      %7 = sbr.rel target = $region3
    $region8: #{tpu_custom_call.1} parent=1 // loop_exit
      _

</llo_original>
